<compile_context>
chip_gen: v7x
topology: tpu7x:2x2x1
jax: 0.10.0
libtpu: 0.0.40
codegen_flags: <defaults>
</compile_context>

<pallas_src>
import numpy as np
import jax
import jax.numpy as jnp
from jax import lax
from jax.experimental import pallas as pl
from jax.experimental.pallas import tpu as pltpu


def make_cbam(N, C, H, W, HID, K, PAD, w_sp_np):
    """Builds the Pallas CBAM callable. w_sp_np: (1, 2, K, K) numpy array."""
    HW = H * W
    # Flat-layout zero padding large enough to cover the most negative/positive
    # tap offset (PAD*W + PAD), rounded up to a whole 128-lane group so the
    # concatenation below is lane-group aligned.
    E = ((PAD * W + PAD + 127) // 128) * 128

    # Per-kw column-validity masks (lane -> original column), f32 {0,1}.
    col = np.arange(HW) % W
    masks_np = np.stack(
        [((col + kw - PAD >= 0) & (col + kw - PAD < W)).astype(np.float32)
         for kw in range(K)], axis=0)                               # (K, HW)
    masks_arr = jnp.asarray(masks_np)

    def cbam_kernel(x_ref, w1t_ref, w2_ref, bns_ref, bnb_ref, m_ref, o_ref):
        x = x_ref[0]                                           # (C, H*W) f32, lane-dense

        # ---------------- Channel attention ----------------
        avg_p = jnp.mean(x, axis=1, keepdims=True)             # (C, 1)
        max_p = jnp.max(x, axis=1, keepdims=True)              # (C, 1)

        w1t = w1t_ref[...]                                     # (C, HID)  == W1.T
        w2 = w2_ref[...]                                       # (C, HID)  == W2
        bns = bns_ref[...]                                     # (1, HID)  folded BN scale
        bnb = bnb_ref[...]                                     # (1, HID)  folded BN shift

        # Shared 1x1-conv MLP (tiny at C=32, HID=2: kept on VPU/XLU on purpose).
        def shared_fc(p):                                      # p: (C, 1)
            h = jnp.sum(w1t * p, axis=0, keepdims=True)        # conv1x1 #1 -> (1, HID)
            h = jnp.maximum(h * bns + bnb, 0.0)                # BN (eval) + ReLU
            return jnp.sum(w2 * h, axis=1, keepdims=True)      # conv1x1 #2 -> (C, 1)

        ca = jax.nn.sigmoid(shared_fc(avg_p) + shared_fc(max_p))   # (C, 1)
        x_ca = x * ca                                          # (C, H*W), stays in vregs

        # ---------------- Spatial attention ----------------
        avg_c = jnp.mean(x_ca, axis=0, keepdims=True)          # (1, H*W)
        max_c = jnp.max(x_ca, axis=0, keepdims=True)           # (1, H*W)

        # Flat zero-padded planes; column wrap-around handled by per-kw masks.
        zpad = jnp.zeros((1, E), jnp.float32)
        pa = jnp.concatenate([zpad, avg_c, zpad], axis=1)      # (1, HW + 2E)
        pm = jnp.concatenate([zpad, max_c, zpad], axis=1)

        acc = jnp.zeros((1, HW), jnp.float32)
        for kw in range(K):
            inner = jnp.zeros((1, HW), jnp.float32)
            for kh in range(K):
                s = E + (kh - PAD) * W + (kw - PAD)            # static lane offset
                inner = inner + float(w_sp_np[0, 0, kh, kw]) * pa[:, s:s + HW]
                inner = inner + float(w_sp_np[0, 1, kh, kw]) * pm[:, s:s + HW]
            acc = acc + m_ref[kw:kw + 1, :] * inner            # one mask mult per kw

        sa = jax.nn.sigmoid(acc)                               # (1, H*W)
        o_ref[0] = (x_ca * sa).astype(o_ref.dtype)             # unmasked, lane-dense store

    call = pl.pallas_call(
        cbam_kernel,
        out_shape=jax.ShapeDtypeStruct((N, C, HW), jnp.float32),
        grid=(N,),
        in_specs=[
            pl.BlockSpec((1, C, HW), lambda n: (n, 0, 0)),     # x, lane-dense slab
            pl.BlockSpec((C, HID), lambda n: (0, 0)),          # W1.T
            pl.BlockSpec((C, HID), lambda n: (0, 0)),          # W2
            pl.BlockSpec((1, HID), lambda n: (0, 0)),          # BN scale (folded)
            pl.BlockSpec((1, HID), lambda n: (0, 0)),          # BN shift (folded)
            pl.BlockSpec((K, HW), lambda n: (0, 0)),           # per-kw column masks
        ],
        out_specs=pl.BlockSpec((1, C, HW), lambda n: (n, 0, 0)),
        compiler_params=pltpu.CompilerParams(dimension_semantics=("parallel",)),
    )

    def cbam(x, w1t, w2, bns, bnb):
        xf = x.reshape(N, C, HW)                               # free view of NCHW
        out = call(xf, w1t, w2, bns, bnb, masks_arr)
        return out.reshape(N, C, H, W)

    return cbam


def cbam_reference(x, w1, w2, bn_scale, bn_shift, w_sp):
    """Pure-JAX reference matching PyTorch semantics (BN in eval mode)."""
    avg_p = jnp.mean(x, axis=(2, 3))                           # (N, C)
    max_p = jnp.max(x, axis=(2, 3))                            # (N, C)

    def shared_fc(p):
        h = p @ w1.T                                           # (N, HID)
        h = jnp.maximum(h * bn_scale + bn_shift, 0.0)
        return h @ w2.T                                        # (N, C)

    ca = jax.nn.sigmoid(shared_fc(avg_p) + shared_fc(max_p))[:, :, None, None]
    x1 = x * ca
    avg_c = jnp.mean(x1, axis=1, keepdims=True)
    max_c = jnp.max(x1, axis=1, keepdims=True)
    cat = jnp.concatenate([avg_c, max_c], axis=1)              # (N, 2, H, W)
    conv = lax.conv_general_dilated(
        cat, w_sp, window_strides=(1, 1), padding=((3, 3), (3, 3)),
        dimension_numbers=("NCHW", "OIHW", "NCHW"))
    sa = jax.nn.sigmoid(conv)
    return x1 * sa


if __name__ == "__main__":
    # channel=32 with reduction=16 -> hidden=2 (must be >= 1)
    N, C, H, W = 2, 32, 16, 16
    RED = 16
    HID = C // RED
    K, PAD = 7, 3

    key = jax.random.PRNGKey(0)
    kx, k1, k2, ksp = jax.random.split(key, 4)

    x = jax.random.normal(kx, (N, C, H, W), dtype=jnp.float32)

    # ChannelAttention fc params: Conv2d(C, HID, 1) and Conv2d(HID, C, 1), no bias.
    w1 = jax.random.normal(k1, (HID, C), dtype=jnp.float32) * 0.2    # (out, in)
    w2 = jax.random.normal(k2, (C, HID), dtype=jnp.float32) * 0.2    # (out, in)

    # BatchNorm2d(HID) in eval mode, deterministic params.
    eps = 1e-5
    bn_gamma = 0.5 + 0.1 * jnp.arange(HID, dtype=jnp.float32)
    bn_beta = 0.05 * jnp.arange(HID, dtype=jnp.float32)
    bn_mean = jnp.zeros((HID,), jnp.float32)
    bn_var = jnp.ones((HID,), jnp.float32)
    bn_scale = bn_gamma / jnp.sqrt(bn_var + eps)                     # (HID,)
    bn_shift = bn_beta - bn_mean * bn_scale                          # (HID,)

    # SpatialAttention conv: Conv2d(2, 1, 7, padding=3, bias=False)
    w_sp = jax.random.normal(ksp, (1, 2, K, K), dtype=jnp.float32) * 0.1
    w_sp_np = np.asarray(w_sp)                                       # baked into kernel

    cbam = make_cbam(N, C, H, W, HID, K, PAD, w_sp_np)
    out = cbam(x, jnp.asarray(w1.T), w2,
               bn_scale.reshape(1, HID), bn_shift.reshape(1, HID))
    out = jax.block_until_ready(out)

    ref = jax.block_until_ready(cbam_reference(x, w1, w2, bn_scale, bn_shift, w_sp))
    assert out.shape == (N, C, H, W)
    assert jnp.allclose(out, ref, atol=1e-4, rtol=1e-4), (
        f"max abs diff = {jnp.max(jnp.abs(out - ref))}")

    print("KERNEL_OK")
</pallas_src>

<mosaic_0001>
module attributes {stable_mosaic.version = 11 : i64} {
  func.func @cbam_kernel(%arg0: i32, %arg1: memref<1x32x256xf32, #tpu.memory_space<vmem>>, %arg2: memref<32x2xf32, #tpu.memory_space<vmem>>, %arg3: memref<32x2xf32, #tpu.memory_space<vmem>>, %arg4: memref<1x2xf32, #tpu.memory_space<vmem>>, %arg5: memref<1x2xf32, #tpu.memory_space<vmem>>, %arg6: memref<7x256xf32, #tpu.memory_space<vmem>>, %arg7: memref<1x32x256xf32, #tpu.memory_space<vmem>>) attributes {dimension_semantics = [#tpu.dimension_semantics<parallel>], iteration_bounds = array<i64: 2>, scalar_prefetch = 0 : i64, scratch_operands = 0 : i64, tpu.core_type = #tpu.core_type<tc>, window_params = [{transform_indices = @transform_0, window_bounds = array<i64: 1, 32, 256>}, {pipeline_mode = #tpu.pipeline_mode<synchronous>, transform_indices = @transform_1, window_bounds = array<i64: 32, 2>}, {pipeline_mode = #tpu.pipeline_mode<synchronous>, transform_indices = @transform_2, window_bounds = array<i64: 32, 2>}, {pipeline_mode = #tpu.pipeline_mode<synchronous>, transform_indices = @transform_3, window_bounds = array<i64: 1, 2>}, {pipeline_mode = #tpu.pipeline_mode<synchronous>, transform_indices = @transform_4, window_bounds = array<i64: 1, 2>}, {pipeline_mode = #tpu.pipeline_mode<synchronous>, transform_indices = @transform_5, window_bounds = array<i64: 7, 256>}, {transform_indices = @transform_6, window_bounds = array<i64: 1, 32, 256>}]} {
    %c0 = arith.constant 0 : index
    %c0_0 = arith.constant 0 : index
    %c0_1 = arith.constant 0 : index
    %0 = vector.load %arg1[%c0, %c0_0, %c0_1] : memref<1x32x256xf32, #tpu.memory_space<vmem>>, vector<1x32x256xf32>
    %1 = vector.shape_cast %0 : vector<1x32x256xf32> to vector<32x256xf32>
    %cst = arith.constant dense<0.000000e+00> : vector<32xf32>
    %2 = vector.multi_reduction <add>, %1, %cst [1] : vector<32x256xf32> to vector<32xf32>
    %3 = vector.shape_cast %2 : vector<32xf32> to vector<32x1xf32>
    %cst_2 = arith.constant 2.560000e+02 : f32
    %4 = vector.broadcast %cst_2 : f32 to vector<32x1xf32>
    %5 = arith.divf %3, %4 : vector<32x1xf32>
    %cst_3 = arith.constant dense<0xFF800000> : vector<32xf32>
    %6 = vector.multi_reduction <maximumf>, %1, %cst_3 [1] : vector<32x256xf32> to vector<32xf32>
    %7 = vector.shape_cast %6 : vector<32xf32> to vector<32x1xf32>
    %c0_4 = arith.constant 0 : index
    %c0_5 = arith.constant 0 : index
    %8 = vector.load %arg2[%c0_4, %c0_5] : memref<32x2xf32, #tpu.memory_space<vmem>>, vector<32x2xf32>
    %c0_6 = arith.constant 0 : index
    %c0_7 = arith.constant 0 : index
    %9 = vector.load %arg3[%c0_6, %c0_7] : memref<32x2xf32, #tpu.memory_space<vmem>>, vector<32x2xf32>
    %c0_8 = arith.constant 0 : index
    %c0_9 = arith.constant 0 : index
    %10 = vector.load %arg4[%c0_8, %c0_9] : memref<1x2xf32, #tpu.memory_space<vmem>>, vector<1x2xf32>
    %c0_10 = arith.constant 0 : index
    %c0_11 = arith.constant 0 : index
    %11 = vector.load %arg5[%c0_10, %c0_11] : memref<1x2xf32, #tpu.memory_space<vmem>>, vector<1x2xf32>
    %12 = vector.broadcast %5 : vector<32x1xf32> to vector<32x2xf32>
    %13 = arith.mulf %8, %12 : vector<32x2xf32>
    %cst_12 = arith.constant dense<0.000000e+00> : vector<2xf32>
    %14 = vector.multi_reduction <add>, %13, %cst_12 [0] : vector<32x2xf32> to vector<2xf32>
    %15 = vector.shape_cast %14 : vector<2xf32> to vector<1x2xf32>
    %16 = arith.mulf %15, %10 : vector<1x2xf32>
    %17 = arith.addf %16, %11 : vector<1x2xf32>
    %cst_13 = arith.constant 0.000000e+00 : f32
    %18 = vector.broadcast %cst_13 : f32 to vector<1x2xf32>
    %19 = arith.maximumf %17, %18 : vector<1x2xf32>
    %20 = vector.broadcast %19 : vector<1x2xf32> to vector<32x2xf32>
    %21 = arith.mulf %9, %20 : vector<32x2xf32>
    %cst_14 = arith.constant dense<0.000000e+00> : vector<32xf32>
    %22 = vector.multi_reduction <add>, %21, %cst_14 [1] : vector<32x2xf32> to vector<32xf32>
    %23 = vector.shape_cast %22 : vector<32xf32> to vector<32x1xf32>
    %24 = vector.broadcast %7 : vector<32x1xf32> to vector<32x2xf32>
    %25 = arith.mulf %8, %24 : vector<32x2xf32>
    %cst_15 = arith.constant dense<0.000000e+00> : vector<2xf32>
    %26 = vector.multi_reduction <add>, %25, %cst_15 [0] : vector<32x2xf32> to vector<2xf32>
    %27 = vector.shape_cast %26 : vector<2xf32> to vector<1x2xf32>
    %28 = arith.mulf %27, %10 : vector<1x2xf32>
    %29 = arith.addf %28, %11 : vector<1x2xf32>
    %cst_16 = arith.constant 0.000000e+00 : f32
    %30 = vector.broadcast %cst_16 : f32 to vector<1x2xf32>
    %31 = arith.maximumf %29, %30 : vector<1x2xf32>
    %32 = vector.broadcast %31 : vector<1x2xf32> to vector<32x2xf32>
    %33 = arith.mulf %9, %32 : vector<32x2xf32>
    %cst_17 = arith.constant dense<0.000000e+00> : vector<32xf32>
    %34 = vector.multi_reduction <add>, %33, %cst_17 [1] : vector<32x2xf32> to vector<32xf32>
    %35 = vector.shape_cast %34 : vector<32xf32> to vector<32x1xf32>
    %36 = arith.addf %23, %35 : vector<32x1xf32>
    %37 = arith.negf %36 : vector<32x1xf32>
    %38 = math.exp %37 : vector<32x1xf32>
    %cst_18 = arith.constant 1.000000e+00 : f32
    %39 = vector.broadcast %cst_18 : f32 to vector<32x1xf32>
    %40 = arith.addf %39, %38 : vector<32x1xf32>
    %41 = arith.divf %39, %40 : vector<32x1xf32>
    %42 = vector.broadcast %41 : vector<32x1xf32> to vector<32x256xf32>
    %43 = arith.mulf %1, %42 : vector<32x256xf32>
    %cst_19 = arith.constant dense<0.000000e+00> : vector<256xf32>
    %44 = vector.multi_reduction <add>, %43, %cst_19 [0] : vector<32x256xf32> to vector<256xf32>
    %45 = vector.shape_cast %44 : vector<256xf32> to vector<1x256xf32>
    %cst_20 = arith.constant 3.200000e+01 : f32
    %46 = vector.broadcast %cst_20 : f32 to vector<1x256xf32>
    %47 = arith.divf %45, %46 : vector<1x256xf32>
    %cst_21 = arith.constant dense<0xFF800000> : vector<256xf32>
    %48 = vector.multi_reduction <maximumf>, %43, %cst_21 [0] : vector<32x256xf32> to vector<256xf32>
    %49 = vector.shape_cast %48 : vector<256xf32> to vector<1x256xf32>
    %cst_22 = arith.constant 0.000000e+00 : f32
    %50 = vector.broadcast %cst_22 : f32 to vector<1x128xf32>
    %51 = tpu.concatenate %50, %47, %50 in 1 : vector<1x128xf32>, vector<1x256xf32>, vector<1x128xf32> -> vector<1x512xf32>
    %52 = tpu.concatenate %50, %49, %50 in 1 : vector<1x128xf32>, vector<1x256xf32>, vector<1x128xf32> -> vector<1x512xf32>
    %cst_23 = arith.constant 0.000000e+00 : f32
    %53 = vector.broadcast %cst_23 : f32 to vector<1x256xf32>
    %cst_24 = arith.constant 0.000000e+00 : f32
    %54 = vector.broadcast %cst_24 : f32 to vector<1x256xf32>
    %55 = vector.extract_strided_slice %51 {offsets = [0, 77], sizes = [1, 256], strides = [1, 1]} : vector<1x512xf32> to vector<1x256xf32>
    %cst_25 = arith.constant -0.0621943585 : f32
    %56 = vector.broadcast %cst_25 : f32 to vector<1x256xf32>
    %57 = arith.mulf %56, %55 : vector<1x256xf32>
    %58 = arith.addf %54, %57 : vector<1x256xf32>
    %59 = vector.extract_strided_slice %52 {offsets = [0, 77], sizes = [1, 256], strides = [1, 1]} : vector<1x512xf32> to vector<1x256xf32>
    %cst_26 = arith.constant 0.0335753337 : f32
    %60 = vector.broadcast %cst_26 : f32 to vector<1x256xf32>
    %61 = arith.mulf %60, %59 : vector<1x256xf32>
    %62 = arith.addf %58, %61 : vector<1x256xf32>
    %63 = vector.extract_strided_slice %51 {offsets = [0, 93], sizes = [1, 256], strides = [1, 1]} : vector<1x512xf32> to vector<1x256xf32>
    %cst_27 = arith.constant -0.0595528744 : f32
    %64 = vector.broadcast %cst_27 : f32 to vector<1x256xf32>
    %65 = arith.mulf %64, %63 : vector<1x256xf32>
    %66 = arith.addf %62, %65 : vector<1x256xf32>
    %67 = vector.extract_strided_slice %52 {offsets = [0, 93], sizes = [1, 256], strides = [1, 1]} : vector<1x512xf32> to vector<1x256xf32>
    %cst_28 = arith.constant -0.045455277 : f32
    %68 = vector.broadcast %cst_28 : f32 to vector<1x256xf32>
    %69 = arith.mulf %68, %67 : vector<1x256xf32>
    %70 = arith.addf %66, %69 : vector<1x256xf32>
    %71 = vector.extract_strided_slice %51 {offsets = [0, 109], sizes = [1, 256], strides = [1, 1]} : vector<1x512xf32> to vector<1x256xf32>
    %cst_29 = arith.constant 0.209614784 : f32
    %72 = vector.broadcast %cst_29 : f32 to vector<1x256xf32>
    %73 = arith.mulf %72, %71 : vector<1x256xf32>
    %74 = arith.addf %70, %73 : vector<1x256xf32>
    %75 = vector.extract_strided_slice %52 {offsets = [0, 109], sizes = [1, 256], strides = [1, 1]} : vector<1x512xf32> to vector<1x256xf32>
    %cst_30 = arith.constant -0.0131642176 : f32
    %76 = vector.broadcast %cst_30 : f32 to vector<1x256xf32>
    %77 = arith.mulf %76, %75 : vector<1x256xf32>
    %78 = arith.addf %74, %77 : vector<1x256xf32>
    %79 = vector.extract_strided_slice %51 {offsets = [0, 125], sizes = [1, 256], strides = [1, 1]} : vector<1x512xf32> to vector<1x256xf32>
    %cst_31 = arith.constant -0.0377203301 : f32
    %80 = vector.broadcast %cst_31 : f32 to vector<1x256xf32>
    %81 = arith.mulf %80, %79 : vector<1x256xf32>
    %82 = arith.addf %78, %81 : vector<1x256xf32>
    %83 = vector.extract_strided_slice %52 {offsets = [0, 125], sizes = [1, 256], strides = [1, 1]} : vector<1x512xf32> to vector<1x256xf32>
    %cst_32 = arith.constant 0.00169173034 : f32
    %84 = vector.broadcast %cst_32 : f32 to vector<1x256xf32>
    %85 = arith.mulf %84, %83 : vector<1x256xf32>
    %86 = arith.addf %82, %85 : vector<1x256xf32>
    %87 = vector.extract_strided_slice %51 {offsets = [0, 141], sizes = [1, 256], strides = [1, 1]} : vector<1x512xf32> to vector<1x256xf32>
    %cst_33 = arith.constant -5.065530e-02 : f32
    %88 = vector.broadcast %cst_33 : f32 to vector<1x256xf32>
    %89 = arith.mulf %88, %87 : vector<1x256xf32>
    %90 = arith.addf %86, %89 : vector<1x256xf32>
    %91 = vector.extract_strided_slice %52 {offsets = [0, 141], sizes = [1, 256], strides = [1, 1]} : vector<1x512xf32> to vector<1x256xf32>
    %cst_34 = arith.constant 0.113356613 : f32
    %92 = vector.broadcast %cst_34 : f32 to vector<1x256xf32>
    %93 = arith.mulf %92, %91 : vector<1x256xf32>
    %94 = arith.addf %90, %93 : vector<1x256xf32>
    %95 = vector.extract_strided_slice %51 {offsets = [0, 157], sizes = [1, 256], strides = [1, 1]} : vector<1x512xf32> to vector<1x256xf32>
    %cst_35 = arith.constant -0.141939491 : f32
    %96 = vector.broadcast %cst_35 : f32 to vector<1x256xf32>
    %97 = arith.mulf %96, %95 : vector<1x256xf32>
    %98 = arith.addf %94, %97 : vector<1x256xf32>
    %99 = vector.extract_strided_slice %52 {offsets = [0, 157], sizes = [1, 256], strides = [1, 1]} : vector<1x512xf32> to vector<1x256xf32>
    %cst_36 = arith.constant 0.0694456175 : f32
    %100 = vector.broadcast %cst_36 : f32 to vector<1x256xf32>
    %101 = arith.mulf %100, %99 : vector<1x256xf32>
    %102 = arith.addf %98, %101 : vector<1x256xf32>
    %103 = vector.extract_strided_slice %51 {offsets = [0, 173], sizes = [1, 256], strides = [1, 1]} : vector<1x512xf32> to vector<1x256xf32>
    %cst_37 = arith.constant 0.0553553179 : f32
    %104 = vector.broadcast %cst_37 : f32 to vector<1x256xf32>
    %105 = arith.mulf %104, %103 : vector<1x256xf32>
    %106 = arith.addf %102, %105 : vector<1x256xf32>
    %107 = vector.extract_strided_slice %52 {offsets = [0, 173], sizes = [1, 256], strides = [1, 1]} : vector<1x512xf32> to vector<1x256xf32>
    %cst_38 = arith.constant 0.0220698025 : f32
    %108 = vector.broadcast %cst_38 : f32 to vector<1x256xf32>
    %109 = arith.mulf %108, %107 : vector<1x256xf32>
    %110 = arith.addf %106, %109 : vector<1x256xf32>
    %c0_39 = arith.constant 0 : index
    %c0_40 = arith.constant 0 : index
    %111 = vector.load %arg6[%c0_39, %c0_40] : memref<7x256xf32, #tpu.memory_space<vmem>>, vector<1x256xf32>
    %112 = arith.mulf %111, %110 : vector<1x256xf32>
    %113 = arith.addf %53, %112 : vector<1x256xf32>
    %cst_41 = arith.constant 0.000000e+00 : f32
    %114 = vector.broadcast %cst_41 : f32 to vector<1x256xf32>
    %115 = vector.extract_strided_slice %51 {offsets = [0, 78], sizes = [1, 256], strides = [1, 1]} : vector<1x512xf32> to vector<1x256xf32>
    %cst_42 = arith.constant 0.0624804086 : f32
    %116 = vector.broadcast %cst_42 : f32 to vector<1x256xf32>
    %117 = arith.mulf %116, %115 : vector<1x256xf32>
    %118 = arith.addf %114, %117 : vector<1x256xf32>
    %119 = vector.extract_strided_slice %52 {offsets = [0, 78], sizes = [1, 256], strides = [1, 1]} : vector<1x512xf32> to vector<1x256xf32>
    %cst_43 = arith.constant 0.0538820028 : f32
    %120 = vector.broadcast %cst_43 : f32 to vector<1x256xf32>
    %121 = arith.mulf %120, %119 : vector<1x256xf32>
    %122 = arith.addf %118, %121 : vector<1x256xf32>
    %123 = vector.extract_strided_slice %51 {offsets = [0, 94], sizes = [1, 256], strides = [1, 1]} : vector<1x512xf32> to vector<1x256xf32>
    %cst_44 = arith.constant 0.120923474 : f32
    %124 = vector.broadcast %cst_44 : f32 to vector<1x256xf32>
    %125 = arith.mulf %124, %123 : vector<1x256xf32>
    %126 = arith.addf %122, %125 : vector<1x256xf32>
    %127 = vector.extract_strided_slice %52 {offsets = [0, 94], sizes = [1, 256], strides = [1, 1]} : vector<1x512xf32> to vector<1x256xf32>
    %cst_45 = arith.constant -0.250614822 : f32
    %128 = vector.broadcast %cst_45 : f32 to vector<1x256xf32>
    %129 = arith.mulf %128, %127 : vector<1x256xf32>
    %130 = arith.addf %126, %129 : vector<1x256xf32>
    %131 = vector.extract_strided_slice %51 {offsets = [0, 110], sizes = [1, 256], strides = [1, 1]} : vector<1x512xf32> to vector<1x256xf32>
    %cst_46 = arith.constant 0.0233610608 : f32
    %132 = vector.broadcast %cst_46 : f32 to vector<1x256xf32>
    %133 = arith.mulf %132, %131 : vector<1x256xf32>
    %134 = arith.addf %130, %133 : vector<1x256xf32>
    %135 = vector.extract_strided_slice %52 {offsets = [0, 110], sizes = [1, 256], strides = [1, 1]} : vector<1x512xf32> to vector<1x256xf32>
    %cst_47 = arith.constant 0.00763903419 : f32
    %136 = vector.broadcast %cst_47 : f32 to vector<1x256xf32>
    %137 = arith.mulf %136, %135 : vector<1x256xf32>
    %138 = arith.addf %134, %137 : vector<1x256xf32>
    %139 = vector.extract_strided_slice %51 {offsets = [0, 126], sizes = [1, 256], strides = [1, 1]} : vector<1x512xf32> to vector<1x256xf32>
    %cst_48 = arith.constant -0.0939235985 : f32
    %140 = vector.broadcast %cst_48 : f32 to vector<1x256xf32>
    %141 = arith.mulf %140, %139 : vector<1x256xf32>
    %142 = arith.addf %138, %141 : vector<1x256xf32>
    %143 = vector.extract_strided_slice %52 {offsets = [0, 126], sizes = [1, 256], strides = [1, 1]} : vector<1x512xf32> to vector<1x256xf32>
    %cst_49 = arith.constant -0.0520761572 : f32
    %144 = vector.broadcast %cst_49 : f32 to vector<1x256xf32>
    %145 = arith.mulf %144, %143 : vector<1x256xf32>
    %146 = arith.addf %142, %145 : vector<1x256xf32>
    %147 = vector.extract_strided_slice %51 {offsets = [0, 142], sizes = [1, 256], strides = [1, 1]} : vector<1x512xf32> to vector<1x256xf32>
    %cst_50 = arith.constant 0.107391022 : f32
    %148 = vector.broadcast %cst_50 : f32 to vector<1x256xf32>
    %149 = arith.mulf %148, %147 : vector<1x256xf32>
    %150 = arith.addf %146, %149 : vector<1x256xf32>
    %151 = vector.extract_strided_slice %52 {offsets = [0, 142], sizes = [1, 256], strides = [1, 1]} : vector<1x512xf32> to vector<1x256xf32>
    %cst_51 = arith.constant 0.0322171859 : f32
    %152 = vector.broadcast %cst_51 : f32 to vector<1x256xf32>
    %153 = arith.mulf %152, %151 : vector<1x256xf32>
    %154 = arith.addf %150, %153 : vector<1x256xf32>
    %155 = vector.extract_strided_slice %51 {offsets = [0, 158], sizes = [1, 256], strides = [1, 1]} : vector<1x512xf32> to vector<1x256xf32>
    %cst_52 = arith.constant 0.0467434488 : f32
    %156 = vector.broadcast %cst_52 : f32 to vector<1x256xf32>
    %157 = arith.mulf %156, %155 : vector<1x256xf32>
    %158 = arith.addf %154, %157 : vector<1x256xf32>
    %159 = vector.extract_strided_slice %52 {offsets = [0, 158], sizes = [1, 256], strides = [1, 1]} : vector<1x512xf32> to vector<1x256xf32>
    %cst_53 = arith.constant -0.127409473 : f32
    %160 = vector.broadcast %cst_53 : f32 to vector<1x256xf32>
    %161 = arith.mulf %160, %159 : vector<1x256xf32>
    %162 = arith.addf %158, %161 : vector<1x256xf32>
    %163 = vector.extract_strided_slice %51 {offsets = [0, 174], sizes = [1, 256], strides = [1, 1]} : vector<1x512xf32> to vector<1x256xf32>
    %cst_54 = arith.constant 0.0249587726 : f32
    %164 = vector.broadcast %cst_54 : f32 to vector<1x256xf32>
    %165 = arith.mulf %164, %163 : vector<1x256xf32>
    %166 = arith.addf %162, %165 : vector<1x256xf32>
    %167 = vector.extract_strided_slice %52 {offsets = [0, 174], sizes = [1, 256], strides = [1, 1]} : vector<1x512xf32> to vector<1x256xf32>
    %cst_55 = arith.constant 0.0424383692 : f32
    %168 = vector.broadcast %cst_55 : f32 to vector<1x256xf32>
    %169 = arith.mulf %168, %167 : vector<1x256xf32>
    %170 = arith.addf %166, %169 : vector<1x256xf32>
    %c1 = arith.constant 1 : index
    %c0_56 = arith.constant 0 : index
    %171 = vector.load %arg6[%c1, %c0_56] : memref<7x256xf32, #tpu.memory_space<vmem>>, vector<1x256xf32>
    %172 = arith.mulf %171, %170 : vector<1x256xf32>
    %173 = arith.addf %113, %172 : vector<1x256xf32>
    %cst_57 = arith.constant 0.000000e+00 : f32
    %174 = vector.broadcast %cst_57 : f32 to vector<1x256xf32>
    %175 = vector.extract_strided_slice %51 {offsets = [0, 79], sizes = [1, 256], strides = [1, 1]} : vector<1x512xf32> to vector<1x256xf32>
    %cst_58 = arith.constant 0.16820775 : f32
    %176 = vector.broadcast %cst_58 : f32 to vector<1x256xf32>
    %177 = arith.mulf %176, %175 : vector<1x256xf32>
    %178 = arith.addf %174, %177 : vector<1x256xf32>
    %179 = vector.extract_strided_slice %52 {offsets = [0, 79], sizes = [1, 256], strides = [1, 1]} : vector<1x512xf32> to vector<1x256xf32>
    %cst_59 = arith.constant 0.0579997264 : f32
    %180 = vector.broadcast %cst_59 : f32 to vector<1x256xf32>
    %181 = arith.mulf %180, %179 : vector<1x256xf32>
    %182 = arith.addf %178, %181 : vector<1x256xf32>
    %183 = vector.extract_strided_slice %51 {offsets = [0, 95], sizes = [1, 256], strides = [1, 1]} : vector<1x512xf32> to vector<1x256xf32>
    %cst_60 = arith.constant 0.147575364 : f32
    %184 = vector.broadcast %cst_60 : f32 to vector<1x256xf32>
    %185 = arith.mulf %184, %183 : vector<1x256xf32>
    %186 = arith.addf %182, %185 : vector<1x256xf32>
    %187 = vector.extract_strided_slice %52 {offsets = [0, 95], sizes = [1, 256], strides = [1, 1]} : vector<1x512xf32> to vector<1x256xf32>
    %cst_61 = arith.constant 0.0157048758 : f32
    %188 = vector.broadcast %cst_61 : f32 to vector<1x256xf32>
    %189 = arith.mulf %188, %187 : vector<1x256xf32>
    %190 = arith.addf %186, %189 : vector<1x256xf32>
    %191 = vector.extract_strided_slice %51 {offsets = [0, 111], sizes = [1, 256], strides = [1, 1]} : vector<1x512xf32> to vector<1x256xf32>
    %cst_62 = arith.constant 0.0545560531 : f32
    %192 = vector.broadcast %cst_62 : f32 to vector<1x256xf32>
    %193 = arith.mulf %192, %191 : vector<1x256xf32>
    %194 = arith.addf %190, %193 : vector<1x256xf32>
    %195 = vector.extract_strided_slice %52 {offsets = [0, 111], sizes = [1, 256], strides = [1, 1]} : vector<1x512xf32> to vector<1x256xf32>
    %cst_63 = arith.constant -0.080988422 : f32
    %196 = vector.broadcast %cst_63 : f32 to vector<1x256xf32>
    %197 = arith.mulf %196, %195 : vector<1x256xf32>
    %198 = arith.addf %194, %197 : vector<1x256xf32>
    %199 = vector.extract_strided_slice %51 {offsets = [0, 127], sizes = [1, 256], strides = [1, 1]} : vector<1x512xf32> to vector<1x256xf32>
    %cst_64 = arith.constant -0.0514096618 : f32
    %200 = vector.broadcast %cst_64 : f32 to vector<1x256xf32>
    %201 = arith.mulf %200, %199 : vector<1x256xf32>
    %202 = arith.addf %198, %201 : vector<1x256xf32>
    %203 = vector.extract_strided_slice %52 {offsets = [0, 127], sizes = [1, 256], strides = [1, 1]} : vector<1x512xf32> to vector<1x256xf32>
    %cst_65 = arith.constant -0.0445321873 : f32
    %204 = vector.broadcast %cst_65 : f32 to vector<1x256xf32>
    %205 = arith.mulf %204, %203 : vector<1x256xf32>
    %206 = arith.addf %202, %205 : vector<1x256xf32>
    %207 = vector.extract_strided_slice %51 {offsets = [0, 143], sizes = [1, 256], strides = [1, 1]} : vector<1x512xf32> to vector<1x256xf32>
    %cst_66 = arith.constant -0.0942836627 : f32
    %208 = vector.broadcast %cst_66 : f32 to vector<1x256xf32>
    %209 = arith.mulf %208, %207 : vector<1x256xf32>
    %210 = arith.addf %206, %209 : vector<1x256xf32>
    %211 = vector.extract_strided_slice %52 {offsets = [0, 143], sizes = [1, 256], strides = [1, 1]} : vector<1x512xf32> to vector<1x256xf32>
    %cst_67 = arith.constant 0.0793950781 : f32
    %212 = vector.broadcast %cst_67 : f32 to vector<1x256xf32>
    %213 = arith.mulf %212, %211 : vector<1x256xf32>
    %214 = arith.addf %210, %213 : vector<1x256xf32>
    %215 = vector.extract_strided_slice %51 {offsets = [0, 159], sizes = [1, 256], strides = [1, 1]} : vector<1x512xf32> to vector<1x256xf32>
    %cst_68 = arith.constant 0.0479224585 : f32
    %216 = vector.broadcast %cst_68 : f32 to vector<1x256xf32>
    %217 = arith.mulf %216, %215 : vector<1x256xf32>
    %218 = arith.addf %214, %217 : vector<1x256xf32>
    %219 = vector.extract_strided_slice %52 {offsets = [0, 159], sizes = [1, 256], strides = [1, 1]} : vector<1x512xf32> to vector<1x256xf32>
    %cst_69 = arith.constant 0.0818707048 : f32
    %220 = vector.broadcast %cst_69 : f32 to vector<1x256xf32>
    %221 = arith.mulf %220, %219 : vector<1x256xf32>
    %222 = arith.addf %218, %221 : vector<1x256xf32>
    %223 = vector.extract_strided_slice %51 {offsets = [0, 175], sizes = [1, 256], strides = [1, 1]} : vector<1x512xf32> to vector<1x256xf32>
    %cst_70 = arith.constant 0.120585792 : f32
    %224 = vector.broadcast %cst_70 : f32 to vector<1x256xf32>
    %225 = arith.mulf %224, %223 : vector<1x256xf32>
    %226 = arith.addf %222, %225 : vector<1x256xf32>
    %227 = vector.extract_strided_slice %52 {offsets = [0, 175], sizes = [1, 256], strides = [1, 1]} : vector<1x512xf32> to vector<1x256xf32>
    %cst_71 = arith.constant 0.00796723273 : f32
    %228 = vector.broadcast %cst_71 : f32 to vector<1x256xf32>
    %229 = arith.mulf %228, %227 : vector<1x256xf32>
    %230 = arith.addf %226, %229 : vector<1x256xf32>
    %c2 = arith.constant 2 : index
    %c0_72 = arith.constant 0 : index
    %231 = vector.load %arg6[%c2, %c0_72] : memref<7x256xf32, #tpu.memory_space<vmem>>, vector<1x256xf32>
    %232 = arith.mulf %231, %230 : vector<1x256xf32>
    %233 = arith.addf %173, %232 : vector<1x256xf32>
    %cst_73 = arith.constant 0.000000e+00 : f32
    %234 = vector.broadcast %cst_73 : f32 to vector<1x256xf32>
    %235 = vector.extract_strided_slice %51 {offsets = [0, 80], sizes = [1, 256], strides = [1, 1]} : vector<1x512xf32> to vector<1x256xf32>
    %cst_74 = arith.constant -0.0808012783 : f32
    %236 = vector.broadcast %cst_74 : f32 to vector<1x256xf32>
    %237 = arith.mulf %236, %235 : vector<1x256xf32>
    %238 = arith.addf %234, %237 : vector<1x256xf32>
    %239 = vector.extract_strided_slice %52 {offsets = [0, 80], sizes = [1, 256], strides = [1, 1]} : vector<1x512xf32> to vector<1x256xf32>
    %cst_75 = arith.constant -0.118861429 : f32
    %240 = vector.broadcast %cst_75 : f32 to vector<1x256xf32>
    %241 = arith.mulf %240, %239 : vector<1x256xf32>
    %242 = arith.addf %238, %241 : vector<1x256xf32>
    %243 = vector.extract_strided_slice %51 {offsets = [0, 96], sizes = [1, 256], strides = [1, 1]} : vector<1x512xf32> to vector<1x256xf32>
    %cst_76 = arith.constant -0.174425647 : f32
    %244 = vector.broadcast %cst_76 : f32 to vector<1x256xf32>
    %245 = arith.mulf %244, %243 : vector<1x256xf32>
    %246 = arith.addf %242, %245 : vector<1x256xf32>
    %247 = vector.extract_strided_slice %52 {offsets = [0, 96], sizes = [1, 256], strides = [1, 1]} : vector<1x512xf32> to vector<1x256xf32>
    %cst_77 = arith.constant 0.068345122 : f32
    %248 = vector.broadcast %cst_77 : f32 to vector<1x256xf32>
    %249 = arith.mulf %248, %247 : vector<1x256xf32>
    %250 = arith.addf %246, %249 : vector<1x256xf32>
    %251 = vector.extract_strided_slice %51 {offsets = [0, 112], sizes = [1, 256], strides = [1, 1]} : vector<1x512xf32> to vector<1x256xf32>
    %cst_78 = arith.constant -0.0970148071 : f32
    %252 = vector.broadcast %cst_78 : f32 to vector<1x256xf32>
    %253 = arith.mulf %252, %251 : vector<1x256xf32>
    %254 = arith.addf %250, %253 : vector<1x256xf32>
    %255 = vector.extract_strided_slice %52 {offsets = [0, 112], sizes = [1, 256], strides = [1, 1]} : vector<1x512xf32> to vector<1x256xf32>
    %cst_79 = arith.constant 0.0789105221 : f32
    %256 = vector.broadcast %cst_79 : f32 to vector<1x256xf32>
    %257 = arith.mulf %256, %255 : vector<1x256xf32>
    %258 = arith.addf %254, %257 : vector<1x256xf32>
    %259 = vector.extract_strided_slice %51 {offsets = [0, 128], sizes = [1, 256], strides = [1, 1]} : vector<1x512xf32> to vector<1x256xf32>
    %cst_80 = arith.constant -0.227865249 : f32
    %260 = vector.broadcast %cst_80 : f32 to vector<1x256xf32>
    %261 = arith.mulf %260, %259 : vector<1x256xf32>
    %262 = arith.addf %258, %261 : vector<1x256xf32>
    %263 = vector.extract_strided_slice %52 {offsets = [0, 128], sizes = [1, 256], strides = [1, 1]} : vector<1x512xf32> to vector<1x256xf32>
    %cst_81 = arith.constant 0.0273719113 : f32
    %264 = vector.broadcast %cst_81 : f32 to vector<1x256xf32>
    %265 = arith.mulf %264, %263 : vector<1x256xf32>
    %266 = arith.addf %262, %265 : vector<1x256xf32>
    %267 = vector.extract_strided_slice %51 {offsets = [0, 144], sizes = [1, 256], strides = [1, 1]} : vector<1x512xf32> to vector<1x256xf32>
    %cst_82 = arith.constant -0.196070269 : f32
    %268 = vector.broadcast %cst_82 : f32 to vector<1x256xf32>
    %269 = arith.mulf %268, %267 : vector<1x256xf32>
    %270 = arith.addf %266, %269 : vector<1x256xf32>
    %271 = vector.extract_strided_slice %52 {offsets = [0, 144], sizes = [1, 256], strides = [1, 1]} : vector<1x512xf32> to vector<1x256xf32>
    %cst_83 = arith.constant -0.0271082111 : f32
    %272 = vector.broadcast %cst_83 : f32 to vector<1x256xf32>
    %273 = arith.mulf %272, %271 : vector<1x256xf32>
    %274 = arith.addf %270, %273 : vector<1x256xf32>
    %275 = vector.extract_strided_slice %51 {offsets = [0, 160], sizes = [1, 256], strides = [1, 1]} : vector<1x512xf32> to vector<1x256xf32>
    %cst_84 = arith.constant -0.0241651908 : f32
    %276 = vector.broadcast %cst_84 : f32 to vector<1x256xf32>
    %277 = arith.mulf %276, %275 : vector<1x256xf32>
    %278 = arith.addf %274, %277 : vector<1x256xf32>
    %279 = vector.extract_strided_slice %52 {offsets = [0, 160], sizes = [1, 256], strides = [1, 1]} : vector<1x512xf32> to vector<1x256xf32>
    %cst_85 = arith.constant -0.0236868579 : f32
    %280 = vector.broadcast %cst_85 : f32 to vector<1x256xf32>
    %281 = arith.mulf %280, %279 : vector<1x256xf32>
    %282 = arith.addf %278, %281 : vector<1x256xf32>
    %283 = vector.extract_strided_slice %51 {offsets = [0, 176], sizes = [1, 256], strides = [1, 1]} : vector<1x512xf32> to vector<1x256xf32>
    %cst_86 = arith.constant -1.565640e-02 : f32
    %284 = vector.broadcast %cst_86 : f32 to vector<1x256xf32>
    %285 = arith.mulf %284, %283 : vector<1x256xf32>
    %286 = arith.addf %282, %285 : vector<1x256xf32>
    %287 = vector.extract_strided_slice %52 {offsets = [0, 176], sizes = [1, 256], strides = [1, 1]} : vector<1x512xf32> to vector<1x256xf32>
    %cst_87 = arith.constant -0.100358032 : f32
    %288 = vector.broadcast %cst_87 : f32 to vector<1x256xf32>
    %289 = arith.mulf %288, %287 : vector<1x256xf32>
    %290 = arith.addf %286, %289 : vector<1x256xf32>
    %c3 = arith.constant 3 : index
    %c0_88 = arith.constant 0 : index
    %291 = vector.load %arg6[%c3, %c0_88] : memref<7x256xf32, #tpu.memory_space<vmem>>, vector<1x256xf32>
    %292 = arith.mulf %291, %290 : vector<1x256xf32>
    %293 = arith.addf %233, %292 : vector<1x256xf32>
    %cst_89 = arith.constant 0.000000e+00 : f32
    %294 = vector.broadcast %cst_89 : f32 to vector<1x256xf32>
    %295 = vector.extract_strided_slice %51 {offsets = [0, 81], sizes = [1, 256], strides = [1, 1]} : vector<1x512xf32> to vector<1x256xf32>
    %cst_90 = arith.constant -0.236621782 : f32
    %296 = vector.broadcast %cst_90 : f32 to vector<1x256xf32>
    %297 = arith.mulf %296, %295 : vector<1x256xf32>
    %298 = arith.addf %294, %297 : vector<1x256xf32>
    %299 = vector.extract_strided_slice %52 {offsets = [0, 81], sizes = [1, 256], strides = [1, 1]} : vector<1x512xf32> to vector<1x256xf32>
    %cst_91 = arith.constant 0.272656113 : f32
    %300 = vector.broadcast %cst_91 : f32 to vector<1x256xf32>
    %301 = arith.mulf %300, %299 : vector<1x256xf32>
    %302 = arith.addf %298, %301 : vector<1x256xf32>
    %303 = vector.extract_strided_slice %51 {offsets = [0, 97], sizes = [1, 256], strides = [1, 1]} : vector<1x512xf32> to vector<1x256xf32>
    %cst_92 = arith.constant -0.0470179133 : f32
    %304 = vector.broadcast %cst_92 : f32 to vector<1x256xf32>
    %305 = arith.mulf %304, %303 : vector<1x256xf32>
    %306 = arith.addf %302, %305 : vector<1x256xf32>
    %307 = vector.extract_strided_slice %52 {offsets = [0, 97], sizes = [1, 256], strides = [1, 1]} : vector<1x512xf32> to vector<1x256xf32>
    %cst_93 = arith.constant -0.0878507644 : f32
    %308 = vector.broadcast %cst_93 : f32 to vector<1x256xf32>
    %309 = arith.mulf %308, %307 : vector<1x256xf32>
    %310 = arith.addf %306, %309 : vector<1x256xf32>
    %311 = vector.extract_strided_slice %51 {offsets = [0, 113], sizes = [1, 256], strides = [1, 1]} : vector<1x512xf32> to vector<1x256xf32>
    %cst_94 = arith.constant 0.0804353579 : f32
    %312 = vector.broadcast %cst_94 : f32 to vector<1x256xf32>
    %313 = arith.mulf %312, %311 : vector<1x256xf32>
    %314 = arith.addf %310, %313 : vector<1x256xf32>
    %315 = vector.extract_strided_slice %52 {offsets = [0, 113], sizes = [1, 256], strides = [1, 1]} : vector<1x512xf32> to vector<1x256xf32>
    %cst_95 = arith.constant -0.0743008628 : f32
    %316 = vector.broadcast %cst_95 : f32 to vector<1x256xf32>
    %317 = arith.mulf %316, %315 : vector<1x256xf32>
    %318 = arith.addf %314, %317 : vector<1x256xf32>
    %319 = vector.extract_strided_slice %51 {offsets = [0, 129], sizes = [1, 256], strides = [1, 1]} : vector<1x512xf32> to vector<1x256xf32>
    %cst_96 = arith.constant -0.153957129 : f32
    %320 = vector.broadcast %cst_96 : f32 to vector<1x256xf32>
    %321 = arith.mulf %320, %319 : vector<1x256xf32>
    %322 = arith.addf %318, %321 : vector<1x256xf32>
    %323 = vector.extract_strided_slice %52 {offsets = [0, 129], sizes = [1, 256], strides = [1, 1]} : vector<1x512xf32> to vector<1x256xf32>
    %cst_97 = arith.constant -0.0413910858 : f32
    %324 = vector.broadcast %cst_97 : f32 to vector<1x256xf32>
    %325 = arith.mulf %324, %323 : vector<1x256xf32>
    %326 = arith.addf %322, %325 : vector<1x256xf32>
    %327 = vector.extract_strided_slice %51 {offsets = [0, 145], sizes = [1, 256], strides = [1, 1]} : vector<1x512xf32> to vector<1x256xf32>
    %cst_98 = arith.constant 0.0573993437 : f32
    %328 = vector.broadcast %cst_98 : f32 to vector<1x256xf32>
    %329 = arith.mulf %328, %327 : vector<1x256xf32>
    %330 = arith.addf %326, %329 : vector<1x256xf32>
    %331 = vector.extract_strided_slice %52 {offsets = [0, 145], sizes = [1, 256], strides = [1, 1]} : vector<1x512xf32> to vector<1x256xf32>
    %cst_99 = arith.constant 0.125755772 : f32
    %332 = vector.broadcast %cst_99 : f32 to vector<1x256xf32>
    %333 = arith.mulf %332, %331 : vector<1x256xf32>
    %334 = arith.addf %330, %333 : vector<1x256xf32>
    %335 = vector.extract_strided_slice %51 {offsets = [0, 161], sizes = [1, 256], strides = [1, 1]} : vector<1x512xf32> to vector<1x256xf32>
    %cst_100 = arith.constant -0.0379637368 : f32
    %336 = vector.broadcast %cst_100 : f32 to vector<1x256xf32>
    %337 = arith.mulf %336, %335 : vector<1x256xf32>
    %338 = arith.addf %334, %337 : vector<1x256xf32>
    %339 = vector.extract_strided_slice %52 {offsets = [0, 161], sizes = [1, 256], strides = [1, 1]} : vector<1x512xf32> to vector<1x256xf32>
    %cst_101 = arith.constant -0.00997001864 : f32
    %340 = vector.broadcast %cst_101 : f32 to vector<1x256xf32>
    %341 = arith.mulf %340, %339 : vector<1x256xf32>
    %342 = arith.addf %338, %341 : vector<1x256xf32>
    %343 = vector.extract_strided_slice %51 {offsets = [0, 177], sizes = [1, 256], strides = [1, 1]} : vector<1x512xf32> to vector<1x256xf32>
    %cst_102 = arith.constant -4.269450e-03 : f32
    %344 = vector.broadcast %cst_102 : f32 to vector<1x256xf32>
    %345 = arith.mulf %344, %343 : vector<1x256xf32>
    %346 = arith.addf %342, %345 : vector<1x256xf32>
    %347 = vector.extract_strided_slice %52 {offsets = [0, 177], sizes = [1, 256], strides = [1, 1]} : vector<1x512xf32> to vector<1x256xf32>
    %cst_103 = arith.constant 0.156728759 : f32
    %348 = vector.broadcast %cst_103 : f32 to vector<1x256xf32>
    %349 = arith.mulf %348, %347 : vector<1x256xf32>
    %350 = arith.addf %346, %349 : vector<1x256xf32>
    %c4 = arith.constant 4 : index
    %c0_104 = arith.constant 0 : index
    %351 = vector.load %arg6[%c4, %c0_104] : memref<7x256xf32, #tpu.memory_space<vmem>>, vector<1x256xf32>
    %352 = arith.mulf %351, %350 : vector<1x256xf32>
    %353 = arith.addf %293, %352 : vector<1x256xf32>
    %cst_105 = arith.constant 0.000000e+00 : f32
    %354 = vector.broadcast %cst_105 : f32 to vector<1x256xf32>
    %355 = vector.extract_strided_slice %51 {offsets = [0, 82], sizes = [1, 256], strides = [1, 1]} : vector<1x512xf32> to vector<1x256xf32>
    %cst_106 = arith.constant 0.0895946323 : f32
    %356 = vector.broadcast %cst_106 : f32 to vector<1x256xf32>
    %357 = arith.mulf %356, %355 : vector<1x256xf32>
    %358 = arith.addf %354, %357 : vector<1x256xf32>
    %359 = vector.extract_strided_slice %52 {offsets = [0, 82], sizes = [1, 256], strides = [1, 1]} : vector<1x512xf32> to vector<1x256xf32>
    %cst_107 = arith.constant 0.0545946173 : f32
    %360 = vector.broadcast %cst_107 : f32 to vector<1x256xf32>
    %361 = arith.mulf %360, %359 : vector<1x256xf32>
    %362 = arith.addf %358, %361 : vector<1x256xf32>
    %363 = vector.extract_strided_slice %51 {offsets = [0, 98], sizes = [1, 256], strides = [1, 1]} : vector<1x512xf32> to vector<1x256xf32>
    %cst_108 = arith.constant -0.0772548914 : f32
    %364 = vector.broadcast %cst_108 : f32 to vector<1x256xf32>
    %365 = arith.mulf %364, %363 : vector<1x256xf32>
    %366 = arith.addf %362, %365 : vector<1x256xf32>
    %367 = vector.extract_strided_slice %52 {offsets = [0, 98], sizes = [1, 256], strides = [1, 1]} : vector<1x512xf32> to vector<1x256xf32>
    %cst_109 = arith.constant -0.0688871443 : f32
    %368 = vector.broadcast %cst_109 : f32 to vector<1x256xf32>
    %369 = arith.mulf %368, %367 : vector<1x256xf32>
    %370 = arith.addf %366, %369 : vector<1x256xf32>
    %371 = vector.extract_strided_slice %51 {offsets = [0, 114], sizes = [1, 256], strides = [1, 1]} : vector<1x512xf32> to vector<1x256xf32>
    %cst_110 = arith.constant 0.0534675606 : f32
    %372 = vector.broadcast %cst_110 : f32 to vector<1x256xf32>
    %373 = arith.mulf %372, %371 : vector<1x256xf32>
    %374 = arith.addf %370, %373 : vector<1x256xf32>
    %375 = vector.extract_strided_slice %52 {offsets = [0, 114], sizes = [1, 256], strides = [1, 1]} : vector<1x512xf32> to vector<1x256xf32>
    %cst_111 = arith.constant -0.0731378645 : f32
    %376 = vector.broadcast %cst_111 : f32 to vector<1x256xf32>
    %377 = arith.mulf %376, %375 : vector<1x256xf32>
    %378 = arith.addf %374, %377 : vector<1x256xf32>
    %379 = vector.extract_strided_slice %51 {offsets = [0, 130], sizes = [1, 256], strides = [1, 1]} : vector<1x512xf32> to vector<1x256xf32>
    %cst_112 = arith.constant 0.0759254768 : f32
    %380 = vector.broadcast %cst_112 : f32 to vector<1x256xf32>
    %381 = arith.mulf %380, %379 : vector<1x256xf32>
    %382 = arith.addf %378, %381 : vector<1x256xf32>
    %383 = vector.extract_strided_slice %52 {offsets = [0, 130], sizes = [1, 256], strides = [1, 1]} : vector<1x512xf32> to vector<1x256xf32>
    %cst_113 = arith.constant 0.10010957 : f32
    %384 = vector.broadcast %cst_113 : f32 to vector<1x256xf32>
    %385 = arith.mulf %384, %383 : vector<1x256xf32>
    %386 = arith.addf %382, %385 : vector<1x256xf32>
    %387 = vector.extract_strided_slice %51 {offsets = [0, 146], sizes = [1, 256], strides = [1, 1]} : vector<1x512xf32> to vector<1x256xf32>
    %cst_114 = arith.constant 0.130148649 : f32
    %388 = vector.broadcast %cst_114 : f32 to vector<1x256xf32>
    %389 = arith.mulf %388, %387 : vector<1x256xf32>
    %390 = arith.addf %386, %389 : vector<1x256xf32>
    %391 = vector.extract_strided_slice %52 {offsets = [0, 146], sizes = [1, 256], strides = [1, 1]} : vector<1x512xf32> to vector<1x256xf32>
    %cst_115 = arith.constant -0.0409102552 : f32
    %392 = vector.broadcast %cst_115 : f32 to vector<1x256xf32>
    %393 = arith.mulf %392, %391 : vector<1x256xf32>
    %394 = arith.addf %390, %393 : vector<1x256xf32>
    %395 = vector.extract_strided_slice %51 {offsets = [0, 162], sizes = [1, 256], strides = [1, 1]} : vector<1x512xf32> to vector<1x256xf32>
    %cst_116 = arith.constant -0.190375909 : f32
    %396 = vector.broadcast %cst_116 : f32 to vector<1x256xf32>
    %397 = arith.mulf %396, %395 : vector<1x256xf32>
    %398 = arith.addf %394, %397 : vector<1x256xf32>
    %399 = vector.extract_strided_slice %52 {offsets = [0, 162], sizes = [1, 256], strides = [1, 1]} : vector<1x512xf32> to vector<1x256xf32>
    %cst_117 = arith.constant -0.0467714667 : f32
    %400 = vector.broadcast %cst_117 : f32 to vector<1x256xf32>
    %401 = arith.mulf %400, %399 : vector<1x256xf32>
    %402 = arith.addf %398, %401 : vector<1x256xf32>
    %403 = vector.extract_strided_slice %51 {offsets = [0, 178], sizes = [1, 256], strides = [1, 1]} : vector<1x512xf32> to vector<1x256xf32>
    %cst_118 = arith.constant -0.0122792302 : f32
    %404 = vector.broadcast %cst_118 : f32 to vector<1x256xf32>
    %405 = arith.mulf %404, %403 : vector<1x256xf32>
    %406 = arith.addf %402, %405 : vector<1x256xf32>
    %407 = vector.extract_strided_slice %52 {offsets = [0, 178], sizes = [1, 256], strides = [1, 1]} : vector<1x512xf32> to vector<1x256xf32>
    %cst_119 = arith.constant -0.0656704158 : f32
    %408 = vector.broadcast %cst_119 : f32 to vector<1x256xf32>
    %409 = arith.mulf %408, %407 : vector<1x256xf32>
    %410 = arith.addf %406, %409 : vector<1x256xf32>
    %c5 = arith.constant 5 : index
    %c0_120 = arith.constant 0 : index
    %411 = vector.load %arg6[%c5, %c0_120] : memref<7x256xf32, #tpu.memory_space<vmem>>, vector<1x256xf32>
    %412 = arith.mulf %411, %410 : vector<1x256xf32>
    %413 = arith.addf %353, %412 : vector<1x256xf32>
    %cst_121 = arith.constant 0.000000e+00 : f32
    %414 = vector.broadcast %cst_121 : f32 to vector<1x256xf32>
    %415 = vector.extract_strided_slice %51 {offsets = [0, 83], sizes = [1, 256], strides = [1, 1]} : vector<1x512xf32> to vector<1x256xf32>
    %cst_122 = arith.constant 0.146280751 : f32
    %416 = vector.broadcast %cst_122 : f32 to vector<1x256xf32>
    %417 = arith.mulf %416, %415 : vector<1x256xf32>
    %418 = arith.addf %414, %417 : vector<1x256xf32>
    %419 = vector.extract_strided_slice %52 {offsets = [0, 83], sizes = [1, 256], strides = [1, 1]} : vector<1x512xf32> to vector<1x256xf32>
    %cst_123 = arith.constant 0.0219785087 : f32
    %420 = vector.broadcast %cst_123 : f32 to vector<1x256xf32>
    %421 = arith.mulf %420, %419 : vector<1x256xf32>
    %422 = arith.addf %418, %421 : vector<1x256xf32>
    %423 = vector.extract_strided_slice %51 {offsets = [0, 99], sizes = [1, 256], strides = [1, 1]} : vector<1x512xf32> to vector<1x256xf32>
    %cst_124 = arith.constant -0.0970396772 : f32
    %424 = vector.broadcast %cst_124 : f32 to vector<1x256xf32>
    %425 = arith.mulf %424, %423 : vector<1x256xf32>
    %426 = arith.addf %422, %425 : vector<1x256xf32>
    %427 = vector.extract_strided_slice %52 {offsets = [0, 99], sizes = [1, 256], strides = [1, 1]} : vector<1x512xf32> to vector<1x256xf32>
    %cst_125 = arith.constant 0.087950334 : f32
    %428 = vector.broadcast %cst_125 : f32 to vector<1x256xf32>
    %429 = arith.mulf %428, %427 : vector<1x256xf32>
    %430 = arith.addf %426, %429 : vector<1x256xf32>
    %431 = vector.extract_strided_slice %51 {offsets = [0, 115], sizes = [1, 256], strides = [1, 1]} : vector<1x512xf32> to vector<1x256xf32>
    %cst_126 = arith.constant 0.155783787 : f32
    %432 = vector.broadcast %cst_126 : f32 to vector<1x256xf32>
    %433 = arith.mulf %432, %431 : vector<1x256xf32>
    %434 = arith.addf %430, %433 : vector<1x256xf32>
    %435 = vector.extract_strided_slice %52 {offsets = [0, 115], sizes = [1, 256], strides = [1, 1]} : vector<1x512xf32> to vector<1x256xf32>
    %cst_127 = arith.constant 0.0130834896 : f32
    %436 = vector.broadcast %cst_127 : f32 to vector<1x256xf32>
    %437 = arith.mulf %436, %435 : vector<1x256xf32>
    %438 = arith.addf %434, %437 : vector<1x256xf32>
    %439 = vector.extract_strided_slice %51 {offsets = [0, 131], sizes = [1, 256], strides = [1, 1]} : vector<1x512xf32> to vector<1x256xf32>
    %cst_128 = arith.constant 0.0407675914 : f32
    %440 = vector.broadcast %cst_128 : f32 to vector<1x256xf32>
    %441 = arith.mulf %440, %439 : vector<1x256xf32>
    %442 = arith.addf %438, %441 : vector<1x256xf32>
    %443 = vector.extract_strided_slice %52 {offsets = [0, 131], sizes = [1, 256], strides = [1, 1]} : vector<1x512xf32> to vector<1x256xf32>
    %cst_129 = arith.constant 0.11120557 : f32
    %444 = vector.broadcast %cst_129 : f32 to vector<1x256xf32>
    %445 = arith.mulf %444, %443 : vector<1x256xf32>
    %446 = arith.addf %442, %445 : vector<1x256xf32>
    %447 = vector.extract_strided_slice %51 {offsets = [0, 147], sizes = [1, 256], strides = [1, 1]} : vector<1x512xf32> to vector<1x256xf32>
    %cst_130 = arith.constant 0.240993425 : f32
    %448 = vector.broadcast %cst_130 : f32 to vector<1x256xf32>
    %449 = arith.mulf %448, %447 : vector<1x256xf32>
    %450 = arith.addf %446, %449 : vector<1x256xf32>
    %451 = vector.extract_strided_slice %52 {offsets = [0, 147], sizes = [1, 256], strides = [1, 1]} : vector<1x512xf32> to vector<1x256xf32>
    %cst_131 = arith.constant -0.0729093253 : f32
    %452 = vector.broadcast %cst_131 : f32 to vector<1x256xf32>
    %453 = arith.mulf %452, %451 : vector<1x256xf32>
    %454 = arith.addf %450, %453 : vector<1x256xf32>
    %455 = vector.extract_strided_slice %51 {offsets = [0, 163], sizes = [1, 256], strides = [1, 1]} : vector<1x512xf32> to vector<1x256xf32>
    %cst_132 = arith.constant -0.168433771 : f32
    %456 = vector.broadcast %cst_132 : f32 to vector<1x256xf32>
    %457 = arith.mulf %456, %455 : vector<1x256xf32>
    %458 = arith.addf %454, %457 : vector<1x256xf32>
    %459 = vector.extract_strided_slice %52 {offsets = [0, 163], sizes = [1, 256], strides = [1, 1]} : vector<1x512xf32> to vector<1x256xf32>
    %cst_133 = arith.constant 0.0542701297 : f32
    %460 = vector.broadcast %cst_133 : f32 to vector<1x256xf32>
    %461 = arith.mulf %460, %459 : vector<1x256xf32>
    %462 = arith.addf %458, %461 : vector<1x256xf32>
    %463 = vector.extract_strided_slice %51 {offsets = [0, 179], sizes = [1, 256], strides = [1, 1]} : vector<1x512xf32> to vector<1x256xf32>
    %cst_134 = arith.constant 0.0411248021 : f32
    %464 = vector.broadcast %cst_134 : f32 to vector<1x256xf32>
    %465 = arith.mulf %464, %463 : vector<1x256xf32>
    %466 = arith.addf %462, %465 : vector<1x256xf32>
    %467 = vector.extract_strided_slice %52 {offsets = [0, 179], sizes = [1, 256], strides = [1, 1]} : vector<1x512xf32> to vector<1x256xf32>
    %cst_135 = arith.constant 0.0622397065 : f32
    %468 = vector.broadcast %cst_135 : f32 to vector<1x256xf32>
    %469 = arith.mulf %468, %467 : vector<1x256xf32>
    %470 = arith.addf %466, %469 : vector<1x256xf32>
    %c6 = arith.constant 6 : index
    %c0_136 = arith.constant 0 : index
    %471 = vector.load %arg6[%c6, %c0_136] : memref<7x256xf32, #tpu.memory_space<vmem>>, vector<1x256xf32>
    %472 = arith.mulf %471, %470 : vector<1x256xf32>
    %473 = arith.addf %413, %472 : vector<1x256xf32>
    %474 = arith.negf %473 : vector<1x256xf32>
    %475 = math.exp %474 : vector<1x256xf32>
    %cst_137 = arith.constant 1.000000e+00 : f32
    %476 = vector.broadcast %cst_137 : f32 to vector<1x256xf32>
    %477 = arith.addf %476, %475 : vector<1x256xf32>
    %478 = arith.divf %476, %477 : vector<1x256xf32>
    %479 = vector.broadcast %478 : vector<1x256xf32> to vector<32x256xf32>
    %480 = arith.mulf %43, %479 : vector<32x256xf32>
    %c0_138 = arith.constant 0 : index
    %c0_139 = arith.constant 0 : index
    %c0_140 = arith.constant 0 : index
    %481 = vector.load %arg7[%c0_138, %c0_139, %c0_140] : memref<1x32x256xf32, #tpu.memory_space<vmem>>, vector<1x32x256xf32>
    %482 = vector.shape_cast %481 : vector<1x32x256xf32> to vector<32x256xf32>
    %483 = vector.shape_cast %480 : vector<32x256xf32> to vector<1x32x256xf32>
    tpu.vector_store %arg7[%c0_138, %c0_139, %c0_140], %483 {strides = array<i32>} : memref<1x32x256xf32, #tpu.memory_space<vmem>>, vector<1x32x256xf32>,
    return
  }
  func.func @transform_0(%arg0: i32) -> (i32, i32, i32) {
    %c0_i32 = arith.constant 0 : i32
    %c0_i32_0 = arith.constant 0 : i32
    %c0_i32_1 = arith.constant 0 : i32
    return %arg0, %c0_i32, %c0_i32_0 : i32, i32, i32
  }
  func.func @transform_1(%arg0: i32) -> (i32, i32) {
    %c0_i32 = arith.constant 0 : i32
    %c0_i32_0 = arith.constant 0 : i32
    %c0_i32_1 = arith.constant 0 : i32
    return %c0_i32, %c0_i32_0 : i32, i32
  }
  func.func @transform_2(%arg0: i32) -> (i32, i32) {
    %c0_i32 = arith.constant 0 : i32
    %c0_i32_0 = arith.constant 0 : i32
    %c0_i32_1 = arith.constant 0 : i32
    return %c0_i32, %c0_i32_0 : i32, i32
  }
  func.func @transform_3(%arg0: i32) -> (i32, i32) {
    %c0_i32 = arith.constant 0 : i32
    %c0_i32_0 = arith.constant 0 : i32
    %c0_i32_1 = arith.constant 0 : i32
    return %c0_i32, %c0_i32_0 : i32, i32
  }
  func.func @transform_4(%arg0: i32) -> (i32, i32) {
    %c0_i32 = arith.constant 0 : i32
    %c0_i32_0 = arith.constant 0 : i32
    %c0_i32_1 = arith.constant 0 : i32
    return %c0_i32, %c0_i32_0 : i32, i32
  }
  func.func @transform_5(%arg0: i32) -> (i32, i32) {
    %c0_i32 = arith.constant 0 : i32
    %c0_i32_0 = arith.constant 0 : i32
    %c0_i32_1 = arith.constant 0 : i32
    return %c0_i32, %c0_i32_0 : i32, i32
  }
  func.func @transform_6(%arg0: i32) -> (i32, i32, i32) {
    %c0_i32 = arith.constant 0 : i32
    %c0_i32_0 = arith.constant 0 : i32
    %c0_i32_1 = arith.constant 0 : i32
    return %arg0, %c0_i32, %c0_i32_0 : i32, i32, i32
  }
}

</mosaic_0001>

<llo_original>
// kernel: tpu_custom_call.1
$region0: #{tpu_custom_call.1}
  #allocation0 [shape = 'u32[]', space=smem, size = 0x4, offset = 0x4, fixed_abs, tag = 'smem constant byte address 0x4 - core index']
  #allocation1 [shape = 'u32[144,128]{1,0:T(1,128)}', space=vmem, size = 0x12000, scoped, tag = 'internal scratch']
  %s0 = inlined_call_operand.hbm [shape: f32[2,32,256], index: 0, kind: input, shape index: {}]
  %s1 = inlined_call_operand.vmem [shape: f32[32,2], index: 1, kind: input, shape index: {}]
  %s2 = inlined_call_operand.vmem [shape: f32[32,2], index: 2, kind: input, shape index: {}]
  %s3 = inlined_call_operand.vmem [shape: f32[1,2], index: 3, kind: input, shape index: {}]
  %s4 = inlined_call_operand.vmem [shape: f32[1,2], index: 4, kind: input, shape index: {}]
  %s5 = inlined_call_operand.vmem [shape: f32[7,256], index: 5, kind: input, shape index: {}]
  %s6 = inlined_call_operand.hbm [shape: f32[2,32,256], index: 6, kind: output, shape index: {}]
  %s7 = sld [smem:[#allocation0]]
  $region61: #{tpu_custom_call.1} parent=0
    _
  %s9 = ssub.s32 1, %s7
  %s10 = scalar_select 0, %s9, %s7
  $region1: #{tpu_custom_call.1} parent=0
    #allocation2 [shape = 'u8[65536]{0}', space=vmem, size = 0x10000, scoped, tag = 'input window, operand 0']
    #allocation3 [shape = 's32[2]{0}', space=sflag, size = 0x8, scoped, tag = 'scoped memory for tpu_custom_call.1']
    #allocation4 [shape = 's32[2]{0}', space=sflag, size = 0x8, scoped, tag = 'scoped memory for tpu_custom_call.1']
    #allocation5 [shape = 'u8[65536]{0}', space=vmem, size = 0x10000, scoped, tag = 'output window, operand 0']
    %11 = vsyncpa [#allocation3], 0
    %s12 = scalar_lea.sflag [#allocation3], 1
    %13 = vsyncpa %s12, 0
    %14 = vsyncpa [#allocation4], 0
    %s15 = scalar_lea.sflag [#allocation4], 1
    %16 = vsyncpa %s15, 0
    loop: start=0, step=1, limit=4
    $region2: #{tpu_custom_call.1} parent=1 // loop_pre_header
      _
    $region3: #{tpu_custom_call.1} parent=1 // loop_header
      %s18 = sphi 0, %s22
      %p19 = scmp.ge.s32.totalorder %s18, 4
      %s28 = sphi 0, %s30
      %s31 = sphi 0, %s28
      %s32 = sphi 0, %s31
      %s48 = sphi 0, %s32
      %s52 = sphi 0, %s52
      %s54 = sphi 0, %s52
      %s55 = sphi 0, %s54
      %s69 = sphi 0, %s55
      %s73 = sphi 0, %s73
      %s75 = sphi 0, %s73
      %s76 = sphi 0, %s75
      %s90 = sphi 0, %s76
      %s94 = sphi 0, %s94
      %s96 = sphi 0, %s94
      %s97 = sphi 0, %s96
      %s111 = sphi 0, %s97
      %s115 = sphi 0, %s115
      %s117 = sphi 0, %s115
      %s118 = sphi 0, %s117
      %s132 = sphi 0, %s118
      %s136 = sphi 0, %s136
      %s138 = sphi 0, %s136
      %s139 = sphi 0, %s138
      %s153 = sphi 0, %s139
      %s159 = sphi 0, %s161
      %s162 = sphi 0, %s159
      %s163 = sphi 0, %s162
      %s179 = sphi 0, %s163
    $region4: #{tpu_custom_call.1} parent=1 // loop_header_branch
      %21 = sbr.rel (%p19) target = $region8
    $region5: #{tpu_custom_call.1} parent=1 // loop_body
      %s23 = ssub.s32 %s18, 1
      %s24 = ssub.s32 %s18, 2
      %s25 = sadd.s32 %s18, 1
      %s26 = ssub.s32 %s18, %s25
      %p27 = scmp.eq.s32.totalorder %s26, 0
      %s29 = sadd.s32 %s28, 1
      %s30 = scalar_select %p27, %s28, %s29
      %p33 = pneg %p27
      %p34 = scmp.eq.s32.totalorder %s18, 1
      %p35 = por %p33, %p34
      %p36 = scmp.ne.s32.totalorder %s28, %s31
      %p37 = scmp.eq.s32.totalorder %s18, 0
      %p38 = por %p36, %p37
      %p39 = scmp.ne.s32.totalorder %s28, %s31
      %p40 = scmp.eq.s32.totalorder %s23, 1
      %p41 = por %p39, %p40
      %p42 = scmp.ne.s32.totalorder %s31, %s32
      %p43 = scmp.eq.s32.totalorder %s23, 0
      %p44 = por %p42, %p43
      %p45 = scmp.ne.s32.totalorder %s31, %s32
      %p46 = scmp.eq.s32.totalorder %s24, 1
      %p47 = por %p45, %p46
      %p49 = scmp.ne.s32.totalorder %s32, %s48
      %p50 = scmp.eq.s32.totalorder %s24, 0
      %p51 = por %p49, %p50
      %s53 = sadd.s32 %s52, 1
      %p56 = scmp.eq.s32.totalorder %s18, 1
      %p57 = scmp.ne.s32.totalorder %s52, %s54
      %p58 = scmp.eq.s32.totalorder %s18, 0
      %p59 = por %p57, %p58
      %p60 = scmp.ne.s32.totalorder %s52, %s54
      %p61 = scmp.eq.s32.totalorder %s23, 1
      %p62 = por %p60, %p61
      %p63 = scmp.ne.s32.totalorder %s54, %s55
      %p64 = scmp.eq.s32.totalorder %s23, 0
      %p65 = por %p63, %p64
      %p66 = scmp.ne.s32.totalorder %s54, %s55
      %p67 = scmp.eq.s32.totalorder %s24, 1
      %p68 = por %p66, %p67
      %p70 = scmp.ne.s32.totalorder %s55, %s69
      %p71 = scmp.eq.s32.totalorder %s24, 0
      %p72 = por %p70, %p71
      %s74 = sadd.s32 %s73, 1
      %p77 = scmp.eq.s32.totalorder %s18, 1
      %p78 = scmp.ne.s32.totalorder %s73, %s75
      %p79 = scmp.eq.s32.totalorder %s18, 0
      %p80 = por %p78, %p79
      %p81 = scmp.ne.s32.totalorder %s73, %s75
      %p82 = scmp.eq.s32.totalorder %s23, 1
      %p83 = por %p81, %p82
      %p84 = scmp.ne.s32.totalorder %s75, %s76
      %p85 = scmp.eq.s32.totalorder %s23, 0
      %p86 = por %p84, %p85
      %p87 = scmp.ne.s32.totalorder %s75, %s76
      %p88 = scmp.eq.s32.totalorder %s24, 1
      %p89 = por %p87, %p88
      %p91 = scmp.ne.s32.totalorder %s76, %s90
      %p92 = scmp.eq.s32.totalorder %s24, 0
      %p93 = por %p91, %p92
      %s95 = sadd.s32 %s94, 1
      %p98 = scmp.eq.s32.totalorder %s18, 1
      %p99 = scmp.ne.s32.totalorder %s94, %s96
      %p100 = scmp.eq.s32.totalorder %s18, 0
      %p101 = por %p99, %p100
      %p102 = scmp.ne.s32.totalorder %s94, %s96
      %p103 = scmp.eq.s32.totalorder %s23, 1
      %p104 = por %p102, %p103
      %p105 = scmp.ne.s32.totalorder %s96, %s97
      %p106 = scmp.eq.s32.totalorder %s23, 0
      %p107 = por %p105, %p106
      %p108 = scmp.ne.s32.totalorder %s96, %s97
      %p109 = scmp.eq.s32.totalorder %s24, 1
      %p110 = por %p108, %p109
      %p112 = scmp.ne.s32.totalorder %s97, %s111
      %p113 = scmp.eq.s32.totalorder %s24, 0
      %p114 = por %p112, %p113
      %s116 = sadd.s32 %s115, 1
      %p119 = scmp.eq.s32.totalorder %s18, 1
      %p120 = scmp.ne.s32.totalorder %s115, %s117
      %p121 = scmp.eq.s32.totalorder %s18, 0
      %p122 = por %p120, %p121
      %p123 = scmp.ne.s32.totalorder %s115, %s117
      %p124 = scmp.eq.s32.totalorder %s23, 1
      %p125 = por %p123, %p124
      %p126 = scmp.ne.s32.totalorder %s117, %s118
      %p127 = scmp.eq.s32.totalorder %s23, 0
      %p128 = por %p126, %p127
      %p129 = scmp.ne.s32.totalorder %s117, %s118
      %p130 = scmp.eq.s32.totalorder %s24, 1
      %p131 = por %p129, %p130
      %p133 = scmp.ne.s32.totalorder %s118, %s132
      %p134 = scmp.eq.s32.totalorder %s24, 0
      %p135 = por %p133, %p134
      %s137 = sadd.s32 %s136, 1
      %p140 = scmp.eq.s32.totalorder %s18, 1
      %p141 = scmp.ne.s32.totalorder %s136, %s138
      %p142 = scmp.eq.s32.totalorder %s18, 0
      %p143 = por %p141, %p142
      %p144 = scmp.ne.s32.totalorder %s136, %s138
      %p145 = scmp.eq.s32.totalorder %s23, 1
      %p146 = por %p144, %p145
      %p147 = scmp.ne.s32.totalorder %s138, %s139
      %p148 = scmp.eq.s32.totalorder %s23, 0
      %p149 = por %p147, %p148
      %p150 = scmp.ne.s32.totalorder %s138, %s139
      %p151 = scmp.eq.s32.totalorder %s24, 1
      %p152 = por %p150, %p151
      %p154 = scmp.ne.s32.totalorder %s139, %s153
      %p155 = scmp.eq.s32.totalorder %s24, 0
      %p156 = por %p154, %p155
      %s157 = ssub.s32 %s18, %s25
      %p158 = scmp.eq.s32.totalorder %s157, 0
      %s160 = sadd.s32 %s159, 1
      %s161 = scalar_select %p158, %s159, %s160
      %p164 = pneg %p158
      %p165 = scmp.eq.s32.totalorder %s18, 1
      %p166 = por %p164, %p165
      %p167 = scmp.ne.s32.totalorder %s159, %s162
      %p168 = scmp.eq.s32.totalorder %s18, 0
      %p169 = por %p167, %p168
      %p170 = scmp.ne.s32.totalorder %s159, %s162
      %p171 = scmp.eq.s32.totalorder %s23, 1
      %p172 = por %p170, %p171
      %p173 = scmp.ne.s32.totalorder %s162, %s163
      %p174 = scmp.eq.s32.totalorder %s23, 0
      %p175 = por %p173, %p174
      %p176 = scmp.ne.s32.totalorder %s162, %s163
      %p177 = scmp.eq.s32.totalorder %s24, 1
      %p178 = por %p176, %p177
      %p180 = scmp.ne.s32.totalorder %s163, %s179
      %p181 = scmp.eq.s32.totalorder %s24, 0
      %p182 = por %p180, %p181
      %p183 = scmp.le.s32.totalorder 1, %s18
      %p184 = scmp.lt.s32.totalorder %s18, 3
      %p185 = pnand %p183, %p184
      %p186 = pneg %p185
      // Predicated region
      $region9: #{tpu_custom_call.1} parent=5 // pred_check
        _
      $region10: #{tpu_custom_call.1} parent=5 // pred_check_branch
        %188 = sbr.rel (%p185) target = $region12
      $region11: #{tpu_custom_call.1} parent=5 // pred_region
        %s189 = ssub.s32 %s18, 1
        // Predicated region
        $region13: #{tpu_custom_call.1} parent=11 // pred_check
          %p190 = pneg %p65
        $region14: #{tpu_custom_call.1} parent=11 // pred_check_branch
          %192 = sbr.rel (%p190) target = $region16
        $region15: #{tpu_custom_call.1} parent=11 // pred_region
          _
        $region16: #{tpu_custom_call.1} parent=11 // pred_fallthru
          _
        // Predicated region
        $region17: #{tpu_custom_call.1} parent=11 // pred_check
          %p193 = pneg %p86
        $region18: #{tpu_custom_call.1} parent=11 // pred_check_branch
          %195 = sbr.rel (%p193) target = $region20
        $region19: #{tpu_custom_call.1} parent=11 // pred_region
          _
        $region20: #{tpu_custom_call.1} parent=11 // pred_fallthru
          _
        // Predicated region
        $region21: #{tpu_custom_call.1} parent=11 // pred_check
          %p196 = pneg %p107
        $region22: #{tpu_custom_call.1} parent=11 // pred_check_branch
          %198 = sbr.rel (%p196) target = $region24
        $region23: #{tpu_custom_call.1} parent=11 // pred_region
          _
        $region24: #{tpu_custom_call.1} parent=11 // pred_fallthru
          _
        // Predicated region
        $region25: #{tpu_custom_call.1} parent=11 // pred_check
          %p199 = pneg %p128
        $region26: #{tpu_custom_call.1} parent=11 // pred_check_branch
          %201 = sbr.rel (%p199) target = $region28
        $region27: #{tpu_custom_call.1} parent=11 // pred_region
          _
        $region28: #{tpu_custom_call.1} parent=11 // pred_fallthru
          _
        // Predicated region
        $region29: #{tpu_custom_call.1} parent=11 // pred_check
          %p202 = pneg %p149
        $region30: #{tpu_custom_call.1} parent=11 // pred_check_branch
          %204 = sbr.rel (%p202) target = $region32
        $region31: #{tpu_custom_call.1} parent=11 // pred_region
          _
        $region32: #{tpu_custom_call.1} parent=11 // pred_fallthru
          _
      $region12: #{tpu_custom_call.1} parent=5 // pred_fallthru
        _
      %p205 = scmp.lt.s32.totalorder %s18, 2
      // Predicated region
      $region33: #{tpu_custom_call.1} parent=5 // pred_check
        %p206 = pneg %p205
      $region34: #{tpu_custom_call.1} parent=5 // pred_check_branch
        %208 = sbr.rel (%p206) target = $region36
      $region35: #{tpu_custom_call.1} parent=5 // pred_region
        // Predicated region
        $region37: #{tpu_custom_call.1} parent=35 // pred_check
          %p209 = pneg %p38
        $region38: #{tpu_custom_call.1} parent=35 // pred_check_branch
          %211 = sbr.rel (%p209) target = $region40
        $region39: #{tpu_custom_call.1} parent=35 // pred_region
          %s212 = sand.u32 %s28, 1
          %s213 = scalar_lea.sflag [#allocation3], %s212
          %s214 = sand.u32 %s28, 1
          %s215 = smul.addr %s214, 64
          %s216 = scalar_lea.vmem [#allocation2], %s215
          %s218 = ssub.s32 1024, 1024
          %219 = vsyncadd %s213, %s218
          %s220 = smul.addr %s18, 8
          %s221 = smul.addr %s220, 128
          %s222 = scalar_lea.hbm %s0, %s221
          %s223 = sshll.u32 %s216, 4
          %s224 = int_to_ptr.vmem [resolvable:$true] %s223
          %229 = dma.hbm_to_vmem [thread:$0]  %s222, 1024, %s224, %s213, 256, 256, 16
        $region40: #{tpu_custom_call.1} parent=35 // pred_fallthru
          _
      $region36: #{tpu_custom_call.1} parent=5 // pred_fallthru
        _
      %p230 = scmp.le.s32.totalorder 1, %s18
      %p231 = scmp.lt.s32.totalorder %s18, 3
      %p232 = pnand %p230, %p231
      %p233 = pneg %p232
      // Predicated region
      $region41: #{tpu_custom_call.1} parent=5 // pred_check
        _
      $region42: #{tpu_custom_call.1} parent=5 // pred_check_branch
        %235 = sbr.rel (%p232) target = $region44
      $region43: #{tpu_custom_call.1} parent=5 // pred_region
        %s236 = ssub.s32 %s18, 1
        %s237 = sand.u32 %s31, 1
        %s238 = scalar_lea.sflag [#allocation3], %s237
        %s239 = sand.u32 %s31, 1
        %s240 = smul.addr %s239, 64
        %s241 = scalar_lea.vmem [#allocation2], %s240
        // Predicated region
        $region45: #{tpu_custom_call.1} parent=43 // pred_check
          %p242 = pneg %p44
        $region46: #{tpu_custom_call.1} parent=43 // pred_check_branch
          %244 = sbr.rel (%p242) target = $region48
        $region47: #{tpu_custom_call.1} parent=43 // pred_region
          %245 = dma.done %s238, 1024
        $region48: #{tpu_custom_call.1} parent=43 // pred_fallthru
          _
        %s246 = sand.u32 %s31, 1
        %s247 = scalar_lea.sflag [#allocation3], %s246
        %s248 = sand.u32 %s31, 1
        %s249 = smul.addr %s248, 64
        %s250 = scalar_lea.vmem [#allocation2], %s249
        %p251 = pneg %p44
        %p252 = pneg %p41
        %p253 = pneg %p65
        %p254 = pneg %p62
        %p255 = pneg %p86
        %p256 = pneg %p83
        %p257 = pneg %p107
        %p258 = pneg %p104
        %p259 = pneg %p128
        %p260 = pneg %p125
        %p261 = pneg %p149
        %p262 = pneg %p146
        %p263 = pneg %p175
        %p264 = pneg %p172
        %s265 = sand.u32 %s162, 1
        %s266 = scalar_lea.sflag [#allocation4], %s265
        %s267 = sand.u32 %s162, 1
        %s268 = smul.addr %s267, 64
        %s269 = scalar_lea.vmem [#allocation5], %s268
        %v270 = vld [vmem:[%s241] sm:$0xff]
        %v271 = vld [vmem:[%s241 + $0x8] sm:$0xff]
        %v272 = vld [vmem:[%s241 + $0x10] sm:$0xff]
        %v273 = vld [vmem:[%s241 + $0x18] sm:$0xff]
        %v274 = vld [vmem:[%s241 + $0x20] sm:$0xff]
        %v275 = vld [vmem:[%s241 + $0x28] sm:$0xff]
        %v276 = vld [vmem:[%s241 + $0x30] sm:$0xff]
        %v277 = vld [vmem:[%s241 + $0x38] sm:$0xff]
        %v278 = vadd.f32 %v270, %v271
        %279 = vadd.xlane.f32.xlu0 %v278
        %v280 = vpop.xlane.xlu0 %279
        %v281 = vadd.f32 %v272, %v273
        %282 = vadd.xlane.f32.xlu0 %v281
        %v283 = vpop.xlane.xlu0 %282
        %v284 = vadd.f32 %v274, %v275
        %285 = vadd.xlane.f32.xlu0 %v284
        %v286 = vpop.xlane.xlu0 %285
        %v287 = vadd.f32 %v276, %v277
        %288 = vadd.xlane.f32.xlu0 %v287
        %v289 = vpop.xlane.xlu0 %288
        %v290 = vrcp.pop 256.0
        %v291 = vmul.f32 %v280, %v290
        %v292 = vmul.f32 %v283, %v290
        %v293 = vmul.f32 %v286, %v290
        %v294 = vmul.f32 %v289, %v290
        %v295 = vmax.f32 %v270, %v271
        %296 = vmax.xlane.f32.xlu0 %v295
        %v297 = vpop.xlane.xlu0 %296
        %v298 = vmax.f32 %v272, %v273
        %299 = vmax.xlane.f32.xlu0 %v298
        %v300 = vpop.xlane.xlu0 %299
        %v301 = vmax.f32 %v274, %v275
        %302 = vmax.xlane.f32.xlu0 %v301
        %v303 = vpop.xlane.xlu0 %302
        %v304 = vmax.f32 %v276, %v277
        %305 = vmax.xlane.f32.xlu0 %v304
        %v306 = vpop.xlane.xlu0 %305
        %v307 = vld [vmem:[%s1] sm:$0xff]
        %v308 = vld [vmem:[%s1 + $0x8] sm:$0xff]
        %v309 = vld [vmem:[%s1 + $0x10] sm:$0xff]
        %v310 = vld [vmem:[%s1 + $0x18] sm:$0xff]
        %v311 = vld [vmem:[%s2] sm:$0xff]
        %v312 = vld [vmem:[%s2 + $0x8] sm:$0xff]
        %v313 = vld [vmem:[%s2 + $0x10] sm:$0xff]
        %v314 = vld [vmem:[%s2 + $0x18] sm:$0xff]
        %v315 = vld [vmem:[%s3] sm:$0x1]
        %v316 = vld [vmem:[%s4] sm:$0x1]
        %v317 = vmul.f32 %v307, %v291
        %v318 = vmul.f32 %v308, %v292
        %v319 = vmul.f32 %v309, %v293
        %v320 = vmul.f32 %v310, %v294
        %vm321 = vcmask 15360
        %v322 = vsel %vm321, %v317, 0.0
        %v323 = vsel %vm321, %v318, 0.0
        %v324 = vadd.f32 %v322, %v323
        %v325 = vsel %vm321, %v319, 0.0
        %v326 = vadd.f32 %v324, %v325
        %v327 = vsel %vm321, %v320, 0.0
        %v328 = vadd.f32 %v326, %v327
        %v329 = vrot.slane %v328, 4
        %v330 = vadd.f32 %v328, %v329
        %v331 = vrot.slane %v330, 2
        %v332 = vadd.f32 %v330, %v331
        %v333 = vrot.slane %v332, 1
        %v334 = vadd.f32 %v332, %v333
        %v335 = vmul.f32 %v334, %v315
        %v336 = vadd.f32 %v335, %v316
        %v337 = vmax.f32 %v336, 0.0
        %v338 = vlaneseq
        %v339 = vshrl.u32 %v338, 7
        %v340 = vsub.s32 0, %v339
        %v341 = vrot.slane %v337, %v340
        %v342 = vmul.f32 %v311, %v341
        %v343 = vmul.f32 %v312, %v341
        %v344 = vmul.f32 %v313, %v341
        %v345 = vmul.f32 %v314, %v341
        %v346 = vsel %vm321, %v342, 0.0
        %347 = vadd.xlane.f32.xlu0 %v346
        %v348 = vpop.xlane.xlu0 %347
        %v349 = vsel %vm321, %v343, 0.0
        %350 = vadd.xlane.f32.xlu0 %v349
        %v351 = vpop.xlane.xlu0 %350
        %v352 = vsel %vm321, %v344, 0.0
        %353 = vadd.xlane.f32.xlu0 %v352
        %v354 = vpop.xlane.xlu0 %353
        %v355 = vsel %vm321, %v345, 0.0
        %356 = vadd.xlane.f32.xlu0 %v355
        %v357 = vpop.xlane.xlu0 %356
        %v358 = vmul.f32 %v307, %v297
        %v359 = vmul.f32 %v308, %v300
        %v360 = vmul.f32 %v309, %v303
        %v361 = vmul.f32 %v310, %v306
        %v362 = vsel %vm321, %v358, 0.0
        %v363 = vsel %vm321, %v359, 0.0
        %v364 = vadd.f32 %v362, %v363
        %v365 = vsel %vm321, %v360, 0.0
        %v366 = vadd.f32 %v364, %v365
        %v367 = vsel %vm321, %v361, 0.0
        %v368 = vadd.f32 %v366, %v367
        %v369 = vrot.slane %v368, 4
        %v370 = vadd.f32 %v368, %v369
        %v371 = vrot.slane %v370, 2
        %v372 = vadd.f32 %v370, %v371
        %v373 = vrot.slane %v372, 1
        %v374 = vadd.f32 %v372, %v373
        %v375 = vmul.f32 %v374, %v315
        %v376 = vadd.f32 %v375, %v316
        %v377 = vmax.f32 %v376, 0.0
        %v378 = vlaneseq
        %v379 = vshrl.u32 %v378, 7
        %v380 = vsub.s32 0, %v379
        %v381 = vrot.slane %v377, %v380
        %v382 = vmul.f32 %v311, %v381
        %v383 = vmul.f32 %v312, %v381
        %v384 = vmul.f32 %v313, %v381
        %v385 = vmul.f32 %v314, %v381
        %v386 = vsel %vm321, %v382, 0.0
        %387 = vadd.xlane.f32.xlu0 %v386
        %v388 = vpop.xlane.xlu0 %387
        %v389 = vsel %vm321, %v383, 0.0
        %390 = vadd.xlane.f32.xlu0 %v389
        %v391 = vpop.xlane.xlu0 %390
        %v392 = vsel %vm321, %v384, 0.0
        %393 = vadd.xlane.f32.xlu0 %v392
        %v394 = vpop.xlane.xlu0 %393
        %v395 = vsel %vm321, %v385, 0.0
        %396 = vadd.xlane.f32.xlu0 %v395
        %v397 = vpop.xlane.xlu0 %396
        %v398 = vadd.f32 %v348, %v388
        %v399 = vadd.f32 %v351, %v391
        %v400 = vadd.f32 %v354, %v394
        %v401 = vadd.f32 %v357, %v397
        %v402 = vxor.u32 %v398, 2147483648
        %v403 = vxor.u32 %v399, 2147483648
        %v404 = vxor.u32 %v400, 2147483648
        %v405 = vxor.u32 %v401, 2147483648
        %v406 = vmul.f32 %v402, 1.442695
        %v407 = vpow.pop %v406
        %v408 = vmul.f32 %v403, 1.442695
        %v409 = vpow.pop %v408
        %v410 = vmul.f32 %v404, 1.442695
        %v411 = vpow.pop %v410
        %v412 = vmul.f32 %v405, 1.442695
        %v413 = vpow.pop %v412
        %v414 = vadd.f32 %v407, 1.0
        %v415 = vadd.f32 %v409, 1.0
        %v416 = vadd.f32 %v411, 1.0
        %v417 = vadd.f32 %v413, 1.0
        %v418 = vrcp.pop %v414
        %v419 = vmul.f32 1.0, %v418
        %v420 = vrcp.pop %v415
        %v421 = vmul.f32 1.0, %v420
        %v422 = vrcp.pop %v416
        %v423 = vmul.f32 1.0, %v422
        %v424 = vrcp.pop %v417
        %v425 = vmul.f32 1.0, %v424
        %v426 = vmul.f32 %v270, %v419
        %v427 = vmul.f32 %v271, %v419
        %v428 = vmul.f32 %v272, %v421
        %v429 = vmul.f32 %v273, %v421
        %v430 = vmul.f32 %v274, %v423
        %v431 = vmul.f32 %v275, %v423
        %v432 = vmul.f32 %v276, %v425
        %v433 = vmul.f32 %v277, %v425
        %v434 = vadd.f32 %v426, %v428
        %v435 = vadd.f32 %v434, %v430
        %v436 = vadd.f32 %v435, %v432
        %v437 = vrot.slane %v436, 4
        %v438 = vadd.f32 %v436, %v437
        %v439 = vrot.slane %v438, 2
        %v440 = vadd.f32 %v438, %v439
        %v441 = vrot.slane %v440, 1
        %v442 = vadd.f32 %v440, %v441
        %v443 = vadd.f32 %v427, %v429
        %v444 = vadd.f32 %v443, %v431
        %v445 = vadd.f32 %v444, %v433
        %v446 = vrot.slane %v445, 4
        %v447 = vadd.f32 %v445, %v446
        %v448 = vrot.slane %v447, 2
        %v449 = vadd.f32 %v447, %v448
        %v450 = vrot.slane %v449, 1
        %v451 = vadd.f32 %v449, %v450
        %v452 = vrcp.pop 32.0
        %v453 = vmul.f32 %v442, %v452
        %v454 = vmul.f32 %v451, %v452
        %v455 = vmax.f32 %v426, %v430
        %v456 = vmax.f32 %v428, %v432
        %v457 = vmax.f32 %v455, %v456
        %v458 = vrot.slane %v457, 4
        %v459 = vmax.f32 %v457, %v458
        %v460 = vrot.slane %v459, 2
        %v461 = vmax.f32 %v459, %v460
        %v462 = vrot.slane %v461, 1
        %v463 = vmax.f32 %v461, %v462
        %v464 = vmax.f32 %v427, %v431
        %v465 = vmax.f32 %v429, %v433
        %v466 = vmax.f32 %v464, %v465
        %v467 = vrot.slane %v466, 4
        %v468 = vmax.f32 %v466, %v467
        %v469 = vrot.slane %v468, 2
        %v470 = vmax.f32 %v468, %v469
        %v471 = vrot.slane %v470, 1
        %v472 = vmax.f32 %v470, %v471
        %v473 = vmul.f32 %v453, -0.06219436
        %v474 = vmul.f32 %v454, -0.06219436
        %v475 = vadd.f32 %v473, 0.0
        %v476 = vadd.f32 %v474, 0.0
        %v477 = vmul.f32 %v463, 0.033575334
        %v478 = vmul.f32 %v472, 0.033575334
        %v479 = vadd.f32 %v475, %v477
        %v480 = vadd.f32 %v476, %v478
        %v481 = vmul.f32 %v453, -0.059552874
        %v482 = vmul.f32 %v454, -0.059552874
        %486 = vrot.lane.b32.xlu0 -0.0, 112
        %v487 = vpop.permute.xlu0 %486
        %488 = vrot.lane.b32.xlu0 %v481, 112
        %v489 = vpop.permute.xlu0 %488
        %490 = vrot.lane.b32.xlu0 %v482, 112
        %v491 = vpop.permute.xlu0 %490
        %vm492 = vcmask 916480
        %v493 = vsel %vm492, %v487, %v489
        %v494 = vsel %vm492, %v489, %v491
        %v498 = vadd.f32 %v493, 0.0
        %v499 = vadd.f32 %v479, %v494
        %v500 = vadd.f32 %v480, %v491
        %v501 = vmul.f32 %v463, -0.045455277
        %v502 = vmul.f32 %v472, -0.045455277
        %505 = vrot.lane.b32.xlu0 %v501, 112
        %v506 = vpop.permute.xlu0 %505
        %507 = vrot.lane.b32.xlu0 %v502, 112
        %v508 = vpop.permute.xlu0 %507
        %v509 = vsel %vm492, %v487, %v506
        %v510 = vsel %vm492, %v506, %v508
        %v514 = vadd.f32 %v498, %v509
        %v515 = vadd.f32 %v499, %v510
        %v516 = vadd.f32 %v500, %v508
        %v517 = vmul.f32 %v453, 0.20961478
        %v518 = vmul.f32 %v454, 0.20961478
        %522 = vrot.lane.b32.xlu0 0.0, 96
        %v523 = vpop.permute.xlu0 %522
        %524 = vrot.lane.b32.xlu0 %v517, 96
        %v525 = vpop.permute.xlu0 %524
        %526 = vrot.lane.b32.xlu0 %v518, 96
        %v527 = vpop.permute.xlu0 %526
        %vm528 = vcmask 785408
        %v529 = vsel %vm528, %v523, %v525
        %v530 = vsel %vm528, %v525, %v527
        %v534 = vadd.f32 %v514, %v529
        %v535 = vadd.f32 %v515, %v530
        %v536 = vadd.f32 %v516, %v527
        %v537 = vmul.f32 %v463, -0.013164218
        %v538 = vmul.f32 %v472, -0.013164218
        %541 = vrot.lane.b32.xlu0 -0.0, 96
        %v542 = vpop.permute.xlu0 %541
        %543 = vrot.lane.b32.xlu0 %v537, 96
        %v544 = vpop.permute.xlu0 %543
        %545 = vrot.lane.b32.xlu0 %v538, 96
        %v546 = vpop.permute.xlu0 %545
        %v547 = vsel %vm528, %v542, %v544
        %v548 = vsel %vm528, %v544, %v546
        %v552 = vadd.f32 %v534, %v547
        %v553 = vadd.f32 %v535, %v548
        %v554 = vadd.f32 %v536, %v546
        %v555 = vmul.f32 %v453, -0.03772033
        %v556 = vmul.f32 %v454, -0.03772033
        %559 = vrot.lane.b32.xlu0 -0.0, 80
        %v560 = vpop.permute.xlu0 %559
        %561 = vrot.lane.b32.xlu0 %v555, 80
        %v562 = vpop.permute.xlu0 %561
        %563 = vrot.lane.b32.xlu0 %v556, 80
        %v564 = vpop.permute.xlu0 %563
        %vm565 = vcmask 654336
        %v566 = vsel %vm565, %v560, %v562
        %v567 = vsel %vm565, %v562, %v564
        %v571 = vadd.f32 %v552, %v566
        %v572 = vadd.f32 %v553, %v567
        %v573 = vadd.f32 %v554, %v564
        %v574 = vmul.f32 %v463, 0.0016917303
        %v575 = vmul.f32 %v472, 0.0016917303
        %578 = vrot.lane.b32.xlu0 0.0, 80
        %v579 = vpop.permute.xlu0 %578
        %580 = vrot.lane.b32.xlu0 %v574, 80
        %v581 = vpop.permute.xlu0 %580
        %582 = vrot.lane.b32.xlu0 %v575, 80
        %v583 = vpop.permute.xlu0 %582
        %v584 = vsel %vm565, %v579, %v581
        %v585 = vsel %vm565, %v581, %v583
        %v589 = vadd.f32 %v571, %v584
        %v590 = vadd.f32 %v572, %v585
        %v591 = vadd.f32 %v573, %v583
        %v592 = vmul.f32 %v453, -0.0506553
        %v593 = vmul.f32 %v454, -0.0506553
        %596 = vrot.lane.b32.xlu0 %v592, 64
        %v597 = vpop.permute.xlu0 %596
        %598 = vrot.lane.b32.xlu0 %v593, 64
        %v599 = vpop.permute.xlu0 %598
        %600 = vrot.lane.b32.xlu0 -0.0, 64
        %v601 = vpop.permute.xlu0 %600
        %vm602 = vcmask 523264
        %v603 = vsel %vm602, %v597, %v599
        %v604 = vsel %vm602, %v599, %v601
        %v608 = vadd.f32 %v589, %v597
        %v609 = vadd.f32 %v590, %v603
        %v610 = vadd.f32 %v591, %v604
        %v611 = vmul.f32 %v463, 0.11335661
        %v612 = vmul.f32 %v472, 0.11335661
        %615 = vrot.lane.b32.xlu0 %v611, 64
        %v616 = vpop.permute.xlu0 %615
        %617 = vrot.lane.b32.xlu0 %v612, 64
        %v618 = vpop.permute.xlu0 %617
        %619 = vrot.lane.b32.xlu0 0.0, 64
        %v620 = vpop.permute.xlu0 %619
        %v621 = vsel %vm602, %v616, %v618
        %v622 = vsel %vm602, %v618, %v620
        %v626 = vadd.f32 %v608, %v616
        %v627 = vadd.f32 %v609, %v621
        %v628 = vadd.f32 %v610, %v622
        %v629 = vmul.f32 %v453, -0.14193949
        %v630 = vmul.f32 %v454, -0.14193949
        %633 = vrot.lane.b32.xlu0 %v629, 48
        %v634 = vpop.permute.xlu0 %633
        %635 = vrot.lane.b32.xlu0 %v630, 48
        %v636 = vpop.permute.xlu0 %635
        %637 = vrot.lane.b32.xlu0 -0.0, 48
        %v638 = vpop.permute.xlu0 %637
        %vm639 = vcmask 392192
        %v640 = vsel %vm639, %v634, %v636
        %v641 = vsel %vm639, %v636, %v638
        %v645 = vadd.f32 %v626, %v634
        %v646 = vadd.f32 %v627, %v640
        %v647 = vadd.f32 %v628, %v641
        %v648 = vmul.f32 %v463, 0.06944562
        %v649 = vmul.f32 %v472, 0.06944562
        %652 = vrot.lane.b32.xlu0 %v648, 48
        %v653 = vpop.permute.xlu0 %652
        %654 = vrot.lane.b32.xlu0 %v649, 48
        %v655 = vpop.permute.xlu0 %654
        %656 = vrot.lane.b32.xlu0 0.0, 48
        %v657 = vpop.permute.xlu0 %656
        %v658 = vsel %vm639, %v653, %v655
        %v659 = vsel %vm639, %v655, %v657
        %v663 = vadd.f32 %v645, %v653
        %v664 = vadd.f32 %v646, %v658
        %v665 = vadd.f32 %v647, %v659
        %v666 = vmul.f32 %v453, 0.055355318
        %v667 = vmul.f32 %v454, 0.055355318
        %670 = vrot.lane.b32.xlu0 %v666, 32
        %v671 = vpop.permute.xlu0 %670
        %672 = vrot.lane.b32.xlu0 %v667, 32
        %v673 = vpop.permute.xlu0 %672
        %674 = vrot.lane.b32.xlu0 0.0, 32
        %v675 = vpop.permute.xlu0 %674
        %vm676 = vcmask 261120
        %v677 = vsel %vm676, %v671, %v673
        %v678 = vsel %vm676, %v673, %v675
        %v682 = vadd.f32 %v663, %v671
        %v683 = vadd.f32 %v664, %v677
        %v684 = vadd.f32 %v665, %v678
        %v685 = vmul.f32 %v463, 0.022069803
        %v686 = vmul.f32 %v472, 0.022069803
        %689 = vrot.lane.b32.xlu0 %v685, 32
        %v690 = vpop.permute.xlu0 %689
        %691 = vrot.lane.b32.xlu0 %v686, 32
        %v692 = vpop.permute.xlu0 %691
        %v693 = vsel %vm676, %v690, %v692
        %v694 = vsel %vm676, %v692, %v675
        %v698 = vadd.f32 %v682, %v690
        %v699 = vadd.f32 %v683, %v693
        %v700 = vadd.f32 %v684, %v694
        %v701 = vld [vmem:[%s5] ss:$8 sm:$0x3]
        %v705 = vcombine.low %v698, %v699
        %v707 = vunpack.c.l.s4 1966171168
        %v708 = vunpack.c.0.s8 %v707
        %v709 = vlaneseq
        %v710 = vshrl.u32 %v709, 7
        %v711 = vsub.s32 %v708, %v710
        %v712 = vrot.slane %v705, %v711
        %v714 = vunpack.c.l.s4 1966171168
        %v715 = vunpack.c.0.s8 %v714
        %v716 = vlaneseq
        %v717 = vshrl.u32 %v716, 7
        %v718 = vsub.s32 %v715, %v717
        %v719 = vrot.slane %v700, %v718
        %v720 = vcombine.low %v712, %v719
        %v722 = vunpack.c.l.s4 1966171168
        %v723 = vunpack.c.0.s8 %v722
        %v724 = vlaneseq
        %v725 = vshrl.u32 %v724, 7
        %v726 = vsub.s32 %v723, %v725
        %v727 = vrot.slane %v720, %v726
        %728 = vrot.lane.b32.xlu0 %v727, 51
        %v729 = vpop.permute.xlu0 %728
        %v730 = vrot.slane %v729, 1
        %vm731 = vcmask 416768
        %v732 = vsel %vm731, %v729, %v730
        %v734 = vmul.f32 %v701, %v732
        %v735 = vadd.f32 %v734, 0.0
        %v736 = vmul.f32 %v453, 0.06248041
        %v737 = vmul.f32 %v454, 0.06248041
        %v738 = vadd.f32 %v736, 0.0
        %v739 = vadd.f32 %v737, 0.0
        %v740 = vmul.f32 %v463, 0.053882003
        %v741 = vmul.f32 %v472, 0.053882003
        %v742 = vadd.f32 %v738, %v740
        %v743 = vadd.f32 %v739, %v741
        %v744 = vmul.f32 %v453, 0.120923474
        %v745 = vmul.f32 %v454, 0.120923474
        %748 = vrot.lane.b32.xlu0 0.0, 112
        %v749 = vpop.permute.xlu0 %748
        %750 = vrot.lane.b32.xlu0 %v744, 112
        %v751 = vpop.permute.xlu0 %750
        %752 = vrot.lane.b32.xlu0 %v745, 112
        %v753 = vpop.permute.xlu0 %752
        %v754 = vsel %vm492, %v749, %v751
        %v755 = vsel %vm492, %v751, %v753
        %v759 = vadd.f32 %v754, 0.0
        %v760 = vadd.f32 %v742, %v755
        %v761 = vadd.f32 %v743, %v753
        %v762 = vmul.f32 %v463, -0.25061482
        %v763 = vmul.f32 %v472, -0.25061482
        %766 = vrot.lane.b32.xlu0 %v762, 112
        %v767 = vpop.permute.xlu0 %766
        %768 = vrot.lane.b32.xlu0 %v763, 112
        %v769 = vpop.permute.xlu0 %768
        %v770 = vsel %vm492, %v487, %v767
        %v771 = vsel %vm492, %v767, %v769
        %v775 = vadd.f32 %v759, %v770
        %v776 = vadd.f32 %v760, %v771
        %v777 = vadd.f32 %v761, %v769
        %v778 = vmul.f32 %v453, 0.02336106
        %v779 = vmul.f32 %v454, 0.02336106
        %782 = vrot.lane.b32.xlu0 %v778, 96
        %v783 = vpop.permute.xlu0 %782
        %784 = vrot.lane.b32.xlu0 %v779, 96
        %v785 = vpop.permute.xlu0 %784
        %v786 = vsel %vm528, %v523, %v783
        %v787 = vsel %vm528, %v783, %v785
        %v791 = vadd.f32 %v775, %v786
        %v792 = vadd.f32 %v776, %v787
        %v793 = vadd.f32 %v777, %v785
        %v794 = vmul.f32 %v463, 0.007639034
        %v795 = vmul.f32 %v472, 0.007639034
        %798 = vrot.lane.b32.xlu0 %v794, 96
        %v799 = vpop.permute.xlu0 %798
        %800 = vrot.lane.b32.xlu0 %v795, 96
        %v801 = vpop.permute.xlu0 %800
        %v802 = vsel %vm528, %v523, %v799
        %v803 = vsel %vm528, %v799, %v801
        %v807 = vadd.f32 %v791, %v802
        %v808 = vadd.f32 %v792, %v803
        %v809 = vadd.f32 %v793, %v801
        %v810 = vmul.f32 %v453, -0.0939236
        %v811 = vmul.f32 %v454, -0.0939236
        %814 = vrot.lane.b32.xlu0 %v810, 80
        %v815 = vpop.permute.xlu0 %814
        %816 = vrot.lane.b32.xlu0 %v811, 80
        %v817 = vpop.permute.xlu0 %816
        %v818 = vsel %vm565, %v560, %v815
        %v819 = vsel %vm565, %v815, %v817
        %v823 = vadd.f32 %v807, %v818
        %v824 = vadd.f32 %v808, %v819
        %v825 = vadd.f32 %v809, %v817
        %v826 = vmul.f32 %v463, -0.052076157
        %v827 = vmul.f32 %v472, -0.052076157
        %830 = vrot.lane.b32.xlu0 %v826, 80
        %v831 = vpop.permute.xlu0 %830
        %832 = vrot.lane.b32.xlu0 %v827, 80
        %v833 = vpop.permute.xlu0 %832
        %v834 = vsel %vm565, %v560, %v831
        %v835 = vsel %vm565, %v831, %v833
        %v839 = vadd.f32 %v823, %v834
        %v840 = vadd.f32 %v824, %v835
        %v841 = vadd.f32 %v825, %v833
        %v842 = vmul.f32 %v453, 0.10739102
        %v843 = vmul.f32 %v454, 0.10739102
        %846 = vrot.lane.b32.xlu0 %v842, 64
        %v847 = vpop.permute.xlu0 %846
        %848 = vrot.lane.b32.xlu0 %v843, 64
        %v849 = vpop.permute.xlu0 %848
        %v850 = vsel %vm602, %v847, %v849
        %v851 = vsel %vm602, %v849, %v620
        %v855 = vadd.f32 %v839, %v847
        %v856 = vadd.f32 %v840, %v850
        %v857 = vadd.f32 %v841, %v851
        %v858 = vmul.f32 %v463, 0.032217186
        %v859 = vmul.f32 %v472, 0.032217186
        %862 = vrot.lane.b32.xlu0 %v858, 64
        %v863 = vpop.permute.xlu0 %862
        %864 = vrot.lane.b32.xlu0 %v859, 64
        %v865 = vpop.permute.xlu0 %864
        %v866 = vsel %vm602, %v863, %v865
        %v867 = vsel %vm602, %v865, %v620
        %v871 = vadd.f32 %v855, %v863
        %v872 = vadd.f32 %v856, %v866
        %v873 = vadd.f32 %v857, %v867
        %v874 = vmul.f32 %v453, 0.04674345
        %v875 = vmul.f32 %v454, 0.04674345
        %878 = vrot.lane.b32.xlu0 %v874, 48
        %v879 = vpop.permute.xlu0 %878
        %880 = vrot.lane.b32.xlu0 %v875, 48
        %v881 = vpop.permute.xlu0 %880
        %v882 = vsel %vm639, %v879, %v881
        %v883 = vsel %vm639, %v881, %v657
        %v887 = vadd.f32 %v871, %v879
        %v888 = vadd.f32 %v872, %v882
        %v889 = vadd.f32 %v873, %v883
        %v890 = vmul.f32 %v463, -0.12740947
        %v891 = vmul.f32 %v472, -0.12740947
        %894 = vrot.lane.b32.xlu0 %v890, 48
        %v895 = vpop.permute.xlu0 %894
        %896 = vrot.lane.b32.xlu0 %v891, 48
        %v897 = vpop.permute.xlu0 %896
        %v898 = vsel %vm639, %v895, %v897
        %v899 = vsel %vm639, %v897, %v638
        %v903 = vadd.f32 %v887, %v895
        %v904 = vadd.f32 %v888, %v898
        %v905 = vadd.f32 %v889, %v899
        %v906 = vmul.f32 %v453, 0.024958773
        %v907 = vmul.f32 %v454, 0.024958773
        %910 = vrot.lane.b32.xlu0 %v906, 32
        %v911 = vpop.permute.xlu0 %910
        %912 = vrot.lane.b32.xlu0 %v907, 32
        %v913 = vpop.permute.xlu0 %912
        %v914 = vsel %vm676, %v911, %v913
        %v915 = vsel %vm676, %v913, %v675
        %v919 = vadd.f32 %v903, %v911
        %v920 = vadd.f32 %v904, %v914
        %v921 = vadd.f32 %v905, %v915
        %v922 = vmul.f32 %v463, 0.04243837
        %v923 = vmul.f32 %v472, 0.04243837
        %926 = vrot.lane.b32.xlu0 %v922, 32
        %v927 = vpop.permute.xlu0 %926
        %928 = vrot.lane.b32.xlu0 %v923, 32
        %v929 = vpop.permute.xlu0 %928
        %v930 = vsel %vm676, %v927, %v929
        %v931 = vsel %vm676, %v929, %v675
        %v935 = vadd.f32 %v919, %v927
        %v936 = vadd.f32 %v920, %v930
        %v937 = vadd.f32 %v921, %v931
        %s938 = scalar_lea.vmem %s5, 1
        %v939 = vld [vmem:[%s938] ss:$8 sm:$0x3]
        %v943 = vcombine.low %v935, %v936
        %v945 = vunpack.c.l.s4 1966171168
        %v946 = vunpack.c.0.s8 %v945
        %v947 = vlaneseq
        %v948 = vshrl.u32 %v947, 7
        %v949 = vsub.s32 %v946, %v948
        %v950 = vrot.slane %v943, %v949
        %v952 = vunpack.c.l.s4 1966171168
        %v953 = vunpack.c.0.s8 %v952
        %v954 = vlaneseq
        %v955 = vshrl.u32 %v954, 7
        %v956 = vsub.s32 %v953, %v955
        %v957 = vrot.slane %v937, %v956
        %v958 = vcombine.low %v950, %v957
        %v960 = vunpack.c.l.s4 1966171168
        %v961 = vunpack.c.0.s8 %v960
        %v962 = vlaneseq
        %v963 = vshrl.u32 %v962, 7
        %v964 = vsub.s32 %v961, %v963
        %v965 = vrot.slane %v958, %v964
        %966 = vrot.lane.b32.xlu0 %v965, 50
        %v967 = vpop.permute.xlu0 %966
        %v968 = vrot.slane %v967, 1
        %vm969 = vcmask 408576
        %v970 = vsel %vm969, %v967, %v968
        %v972 = vmul.f32 %v939, %v970
        %v973 = vadd.f32 %v735, %v972
        %v974 = vmul.f32 %v453, 0.16820775
        %v975 = vmul.f32 %v454, 0.16820775
        %v976 = vadd.f32 %v974, 0.0
        %v977 = vadd.f32 %v975, 0.0
        %v978 = vmul.f32 %v463, 0.057999726
        %v979 = vmul.f32 %v472, 0.057999726
        %v980 = vadd.f32 %v976, %v978
        %v981 = vadd.f32 %v977, %v979
        %v982 = vmul.f32 %v453, 0.14757536
        %v983 = vmul.f32 %v454, 0.14757536
        %986 = vrot.lane.b32.xlu0 %v982, 112
        %v987 = vpop.permute.xlu0 %986
        %988 = vrot.lane.b32.xlu0 %v983, 112
        %v989 = vpop.permute.xlu0 %988
        %v990 = vsel %vm492, %v749, %v987
        %v991 = vsel %vm492, %v987, %v989
        %v995 = vadd.f32 %v990, 0.0
        %v996 = vadd.f32 %v980, %v991
        %v997 = vadd.f32 %v981, %v989
        %v998 = vmul.f32 %v463, 0.015704876
        %v999 = vmul.f32 %v472, 0.015704876
        %1002 = vrot.lane.b32.xlu0 %v998, 112
        %v1003 = vpop.permute.xlu0 %1002
        %1004 = vrot.lane.b32.xlu0 %v999, 112
        %v1005 = vpop.permute.xlu0 %1004
        %v1006 = vsel %vm492, %v749, %v1003
        %v1007 = vsel %vm492, %v1003, %v1005
        %v1011 = vadd.f32 %v995, %v1006
        %v1012 = vadd.f32 %v996, %v1007
        %v1013 = vadd.f32 %v997, %v1005
        %v1014 = vmul.f32 %v453, 0.054556053
        %v1015 = vmul.f32 %v454, 0.054556053
        %1018 = vrot.lane.b32.xlu0 %v1014, 96
        %v1019 = vpop.permute.xlu0 %1018
        %1020 = vrot.lane.b32.xlu0 %v1015, 96
        %v1021 = vpop.permute.xlu0 %1020
        %v1022 = vsel %vm528, %v523, %v1019
        %v1023 = vsel %vm528, %v1019, %v1021
        %v1027 = vadd.f32 %v1011, %v1022
        %v1028 = vadd.f32 %v1012, %v1023
        %v1029 = vadd.f32 %v1013, %v1021
        %v1030 = vmul.f32 %v463, -0.08098842
        %v1031 = vmul.f32 %v472, -0.08098842
        %1034 = vrot.lane.b32.xlu0 %v1030, 96
        %v1035 = vpop.permute.xlu0 %1034
        %1036 = vrot.lane.b32.xlu0 %v1031, 96
        %v1037 = vpop.permute.xlu0 %1036
        %v1038 = vsel %vm528, %v542, %v1035
        %v1039 = vsel %vm528, %v1035, %v1037
        %v1043 = vadd.f32 %v1027, %v1038
        %v1044 = vadd.f32 %v1028, %v1039
        %v1045 = vadd.f32 %v1029, %v1037
        %v1046 = vmul.f32 %v453, -0.05140966
        %v1047 = vmul.f32 %v454, -0.05140966
        %1050 = vrot.lane.b32.xlu0 %v1046, 80
        %v1051 = vpop.permute.xlu0 %1050
        %1052 = vrot.lane.b32.xlu0 %v1047, 80
        %v1053 = vpop.permute.xlu0 %1052
        %v1054 = vsel %vm565, %v560, %v1051
        %v1055 = vsel %vm565, %v1051, %v1053
        %v1059 = vadd.f32 %v1043, %v1054
        %v1060 = vadd.f32 %v1044, %v1055
        %v1061 = vadd.f32 %v1045, %v1053
        %v1062 = vmul.f32 %v463, -0.044532187
        %v1063 = vmul.f32 %v472, -0.044532187
        %1066 = vrot.lane.b32.xlu0 %v1062, 80
        %v1067 = vpop.permute.xlu0 %1066
        %1068 = vrot.lane.b32.xlu0 %v1063, 80
        %v1069 = vpop.permute.xlu0 %1068
        %v1070 = vsel %vm565, %v560, %v1067
        %v1071 = vsel %vm565, %v1067, %v1069
        %v1075 = vadd.f32 %v1059, %v1070
        %v1076 = vadd.f32 %v1060, %v1071
        %v1077 = vadd.f32 %v1061, %v1069
        %v1078 = vmul.f32 %v453, -0.09428366
        %v1079 = vmul.f32 %v454, -0.09428366
        %1082 = vrot.lane.b32.xlu0 %v1078, 64
        %v1083 = vpop.permute.xlu0 %1082
        %1084 = vrot.lane.b32.xlu0 %v1079, 64
        %v1085 = vpop.permute.xlu0 %1084
        %v1086 = vsel %vm602, %v1083, %v1085
        %v1087 = vsel %vm602, %v1085, %v601
        %v1091 = vadd.f32 %v1075, %v1083
        %v1092 = vadd.f32 %v1076, %v1086
        %v1093 = vadd.f32 %v1077, %v1087
        %v1094 = vmul.f32 %v463, 0.07939508
        %v1095 = vmul.f32 %v472, 0.07939508
        %1098 = vrot.lane.b32.xlu0 %v1094, 64
        %v1099 = vpop.permute.xlu0 %1098
        %1100 = vrot.lane.b32.xlu0 %v1095, 64
        %v1101 = vpop.permute.xlu0 %1100
        %v1102 = vsel %vm602, %v1099, %v1101
        %v1103 = vsel %vm602, %v1101, %v620
        %v1107 = vadd.f32 %v1091, %v1099
        %v1108 = vadd.f32 %v1092, %v1102
        %v1109 = vadd.f32 %v1093, %v1103
        %v1110 = vmul.f32 %v453, 0.04792246
        %v1111 = vmul.f32 %v454, 0.04792246
        %1114 = vrot.lane.b32.xlu0 %v1110, 48
        %v1115 = vpop.permute.xlu0 %1114
        %1116 = vrot.lane.b32.xlu0 %v1111, 48
        %v1117 = vpop.permute.xlu0 %1116
        %v1118 = vsel %vm639, %v1115, %v1117
        %v1119 = vsel %vm639, %v1117, %v657
        %v1123 = vadd.f32 %v1107, %v1115
        %v1124 = vadd.f32 %v1108, %v1118
        %v1125 = vadd.f32 %v1109, %v1119
        %v1126 = vmul.f32 %v463, 0.081870705
        %v1127 = vmul.f32 %v472, 0.081870705
        %1130 = vrot.lane.b32.xlu0 %v1126, 48
        %v1131 = vpop.permute.xlu0 %1130
        %1132 = vrot.lane.b32.xlu0 %v1127, 48
        %v1133 = vpop.permute.xlu0 %1132
        %v1134 = vsel %vm639, %v1131, %v1133
        %v1135 = vsel %vm639, %v1133, %v657
        %v1139 = vadd.f32 %v1123, %v1131
        %v1140 = vadd.f32 %v1124, %v1134
        %v1141 = vadd.f32 %v1125, %v1135
        %v1142 = vmul.f32 %v453, 0.12058579
        %v1143 = vmul.f32 %v454, 0.12058579
        %1146 = vrot.lane.b32.xlu0 %v1142, 32
        %v1147 = vpop.permute.xlu0 %1146
        %1148 = vrot.lane.b32.xlu0 %v1143, 32
        %v1149 = vpop.permute.xlu0 %1148
        %v1150 = vsel %vm676, %v1147, %v1149
        %v1151 = vsel %vm676, %v1149, %v675
        %v1155 = vadd.f32 %v1139, %v1147
        %v1156 = vadd.f32 %v1140, %v1150
        %v1157 = vadd.f32 %v1141, %v1151
        %v1158 = vmul.f32 %v463, 0.007967233
        %v1159 = vmul.f32 %v472, 0.007967233
        %1162 = vrot.lane.b32.xlu0 %v1158, 32
        %v1163 = vpop.permute.xlu0 %1162
        %1164 = vrot.lane.b32.xlu0 %v1159, 32
        %v1165 = vpop.permute.xlu0 %1164
        %v1166 = vsel %vm676, %v1163, %v1165
        %v1167 = vsel %vm676, %v1165, %v675
        %v1171 = vadd.f32 %v1155, %v1163
        %v1172 = vadd.f32 %v1156, %v1166
        %v1173 = vadd.f32 %v1157, %v1167
        %s1174 = scalar_lea.vmem %s5, 2
        %v1175 = vld [vmem:[%s1174] ss:$8 sm:$0x3]
        %v1179 = vcombine.low %v1171, %v1172
        %v1181 = vunpack.c.l.s4 1966171168
        %v1182 = vunpack.c.0.s8 %v1181
        %v1183 = vlaneseq
        %v1184 = vshrl.u32 %v1183, 7
        %v1185 = vsub.s32 %v1182, %v1184
        %v1186 = vrot.slane %v1179, %v1185
        %v1188 = vunpack.c.l.s4 1966171168
        %v1189 = vunpack.c.0.s8 %v1188
        %v1190 = vlaneseq
        %v1191 = vshrl.u32 %v1190, 7
        %v1192 = vsub.s32 %v1189, %v1191
        %v1193 = vrot.slane %v1173, %v1192
        %v1194 = vcombine.low %v1186, %v1193
        %v1196 = vunpack.c.l.s4 1966171168
        %v1197 = vunpack.c.0.s8 %v1196
        %v1198 = vlaneseq
        %v1199 = vshrl.u32 %v1198, 7
        %v1200 = vsub.s32 %v1197, %v1199
        %v1201 = vrot.slane %v1194, %v1200
        %1202 = vrot.lane.b32.xlu0 %v1201, 49
        %v1203 = vpop.permute.xlu0 %1202
        %v1204 = vrot.slane %v1203, 1
        %vm1205 = vcmask 400384
        %v1206 = vsel %vm1205, %v1203, %v1204
        %v1208 = vmul.f32 %v1175, %v1206
        %v1209 = vadd.f32 %v973, %v1208
        %v1210 = vmul.f32 %v453, -0.08080128
        %v1211 = vmul.f32 %v454, -0.08080128
        %v1212 = vadd.f32 %v1210, 0.0
        %v1213 = vadd.f32 %v1211, 0.0
        %v1214 = vmul.f32 %v463, -0.11886143
        %v1215 = vmul.f32 %v472, -0.11886143
        %v1216 = vadd.f32 %v1212, %v1214
        %v1217 = vadd.f32 %v1213, %v1215
        %v1218 = vmul.f32 %v453, -0.17442565
        %v1219 = vmul.f32 %v454, -0.17442565
        %1222 = vrot.lane.b32.xlu0 %v1218, 112
        %v1223 = vpop.permute.xlu0 %1222
        %1224 = vrot.lane.b32.xlu0 %v1219, 112
        %v1225 = vpop.permute.xlu0 %1224
        %v1226 = vsel %vm492, %v487, %v1223
        %v1227 = vsel %vm492, %v1223, %v1225
        %v1231 = vadd.f32 %v1226, 0.0
        %v1232 = vadd.f32 %v1216, %v1227
        %v1233 = vadd.f32 %v1217, %v1225
        %v1234 = vmul.f32 %v463, 0.06834512
        %v1235 = vmul.f32 %v472, 0.06834512
        %1238 = vrot.lane.b32.xlu0 %v1234, 112
        %v1239 = vpop.permute.xlu0 %1238
        %1240 = vrot.lane.b32.xlu0 %v1235, 112
        %v1241 = vpop.permute.xlu0 %1240
        %v1242 = vsel %vm492, %v749, %v1239
        %v1243 = vsel %vm492, %v1239, %v1241
        %v1247 = vadd.f32 %v1231, %v1242
        %v1248 = vadd.f32 %v1232, %v1243
        %v1249 = vadd.f32 %v1233, %v1241
        %v1250 = vmul.f32 %v453, -0.09701481
        %v1251 = vmul.f32 %v454, -0.09701481
        %1254 = vrot.lane.b32.xlu0 %v1250, 96
        %v1255 = vpop.permute.xlu0 %1254
        %1256 = vrot.lane.b32.xlu0 %v1251, 96
        %v1257 = vpop.permute.xlu0 %1256
        %v1258 = vsel %vm528, %v542, %v1255
        %v1259 = vsel %vm528, %v1255, %v1257
        %v1263 = vadd.f32 %v1247, %v1258
        %v1264 = vadd.f32 %v1248, %v1259
        %v1265 = vadd.f32 %v1249, %v1257
        %v1266 = vmul.f32 %v463, 0.07891052
        %v1267 = vmul.f32 %v472, 0.07891052
        %1270 = vrot.lane.b32.xlu0 %v1266, 96
        %v1271 = vpop.permute.xlu0 %1270
        %1272 = vrot.lane.b32.xlu0 %v1267, 96
        %v1273 = vpop.permute.xlu0 %1272
        %v1274 = vsel %vm528, %v523, %v1271
        %v1275 = vsel %vm528, %v1271, %v1273
        %v1279 = vadd.f32 %v1263, %v1274
        %v1280 = vadd.f32 %v1264, %v1275
        %v1281 = vadd.f32 %v1265, %v1273
        %v1282 = vmul.f32 %v453, -0.22786525
        %v1283 = vmul.f32 %v454, -0.22786525
        %1286 = vrot.lane.b32.xlu0 %v1282, 80
        %v1287 = vpop.permute.xlu0 %1286
        %1288 = vrot.lane.b32.xlu0 %v1283, 80
        %v1289 = vpop.permute.xlu0 %1288
        %v1290 = vsel %vm565, %v1287, %v1289
        %v1294 = vadd.f32 %v1279, %v1287
        %v1295 = vadd.f32 %v1280, %v1290
        %v1296 = vadd.f32 %v1281, %v1289
        %v1297 = vmul.f32 %v463, 0.027371911
        %v1298 = vmul.f32 %v472, 0.027371911
        %1301 = vrot.lane.b32.xlu0 %v1297, 80
        %v1302 = vpop.permute.xlu0 %1301
        %1303 = vrot.lane.b32.xlu0 %v1298, 80
        %v1304 = vpop.permute.xlu0 %1303
        %v1305 = vsel %vm565, %v1302, %v1304
        %v1309 = vadd.f32 %v1294, %v1302
        %v1310 = vadd.f32 %v1295, %v1305
        %v1311 = vadd.f32 %v1296, %v1304
        %v1312 = vmul.f32 %v453, -0.19607027
        %v1313 = vmul.f32 %v454, -0.19607027
        %1316 = vrot.lane.b32.xlu0 %v1312, 64
        %v1317 = vpop.permute.xlu0 %1316
        %1318 = vrot.lane.b32.xlu0 %v1313, 64
        %v1319 = vpop.permute.xlu0 %1318
        %v1320 = vsel %vm602, %v1317, %v1319
        %v1321 = vsel %vm602, %v1319, %v601
        %v1325 = vadd.f32 %v1309, %v1317
        %v1326 = vadd.f32 %v1310, %v1320
        %v1327 = vadd.f32 %v1311, %v1321
        %v1328 = vmul.f32 %v463, -0.027108211
        %v1329 = vmul.f32 %v472, -0.027108211
        %1332 = vrot.lane.b32.xlu0 %v1328, 64
        %v1333 = vpop.permute.xlu0 %1332
        %1334 = vrot.lane.b32.xlu0 %v1329, 64
        %v1335 = vpop.permute.xlu0 %1334
        %v1336 = vsel %vm602, %v1333, %v1335
        %v1337 = vsel %vm602, %v1335, %v601
        %v1341 = vadd.f32 %v1325, %v1333
        %v1342 = vadd.f32 %v1326, %v1336
        %v1343 = vadd.f32 %v1327, %v1337
        %v1344 = vmul.f32 %v453, -0.02416519
        %v1345 = vmul.f32 %v454, -0.02416519
        %1348 = vrot.lane.b32.xlu0 %v1344, 48
        %v1349 = vpop.permute.xlu0 %1348
        %1350 = vrot.lane.b32.xlu0 %v1345, 48
        %v1351 = vpop.permute.xlu0 %1350
        %v1352 = vsel %vm639, %v1349, %v1351
        %v1353 = vsel %vm639, %v1351, %v638
        %v1357 = vadd.f32 %v1341, %v1349
        %v1358 = vadd.f32 %v1342, %v1352
        %v1359 = vadd.f32 %v1343, %v1353
        %v1360 = vmul.f32 %v463, -0.023686858
        %v1361 = vmul.f32 %v472, -0.023686858
        %1364 = vrot.lane.b32.xlu0 %v1360, 48
        %v1365 = vpop.permute.xlu0 %1364
        %1366 = vrot.lane.b32.xlu0 %v1361, 48
        %v1367 = vpop.permute.xlu0 %1366
        %v1368 = vsel %vm639, %v1365, %v1367
        %v1369 = vsel %vm639, %v1367, %v638
        %v1373 = vadd.f32 %v1357, %v1365
        %v1374 = vadd.f32 %v1358, %v1368
        %v1375 = vadd.f32 %v1359, %v1369
        %v1376 = vmul.f32 %v453, -0.0156564
        %v1377 = vmul.f32 %v454, -0.0156564
        %1380 = vrot.lane.b32.xlu0 %v1376, 32
        %v1381 = vpop.permute.xlu0 %1380
        %1382 = vrot.lane.b32.xlu0 %v1377, 32
        %v1383 = vpop.permute.xlu0 %1382
        %1384 = vrot.lane.b32.xlu0 -0.0, 32
        %v1385 = vpop.permute.xlu0 %1384
        %v1386 = vsel %vm676, %v1381, %v1383
        %v1387 = vsel %vm676, %v1383, %v1385
        %v1391 = vadd.f32 %v1373, %v1381
        %v1392 = vadd.f32 %v1374, %v1386
        %v1393 = vadd.f32 %v1375, %v1387
        %v1394 = vmul.f32 %v463, -0.10035803
        %v1395 = vmul.f32 %v472, -0.10035803
        %1398 = vrot.lane.b32.xlu0 %v1394, 32
        %v1399 = vpop.permute.xlu0 %1398
        %1400 = vrot.lane.b32.xlu0 %v1395, 32
        %v1401 = vpop.permute.xlu0 %1400
        %v1402 = vsel %vm676, %v1399, %v1401
        %v1403 = vsel %vm676, %v1401, %v1385
        %v1407 = vadd.f32 %v1391, %v1399
        %v1408 = vadd.f32 %v1392, %v1402
        %v1409 = vadd.f32 %v1393, %v1403
        %s1410 = scalar_lea.vmem %s5, 3
        %v1411 = vld [vmem:[%s1410] ss:$8 sm:$0x3]
        %v1415 = vcombine.low %v1407, %v1408
        %v1417 = vunpack.c.l.s4 1966171168
        %v1418 = vunpack.c.0.s8 %v1417
        %v1419 = vlaneseq
        %v1420 = vshrl.u32 %v1419, 7
        %v1421 = vsub.s32 %v1418, %v1420
        %v1422 = vrot.slane %v1415, %v1421
        %v1424 = vunpack.c.l.s4 1966171168
        %v1425 = vunpack.c.0.s8 %v1424
        %v1426 = vlaneseq
        %v1427 = vshrl.u32 %v1426, 7
        %v1428 = vsub.s32 %v1425, %v1427
        %v1429 = vrot.slane %v1409, %v1428
        %v1430 = vcombine.low %v1422, %v1429
        %v1432 = vunpack.c.l.s4 1966171168
        %v1433 = vunpack.c.0.s8 %v1432
        %v1434 = vlaneseq
        %v1435 = vshrl.u32 %v1434, 7
        %v1436 = vsub.s32 %v1433, %v1435
        %v1437 = vrot.slane %v1430, %v1436
        %1438 = vrot.lane.b32.xlu0 %v1437, 48
        %v1439 = vpop.permute.xlu0 %1438
        %v1440 = vrot.slane %v1439, 1
        %v1441 = vsel %vm639, %v1439, %v1440
        %v1443 = vmul.f32 %v1411, %v1441
        %v1444 = vadd.f32 %v1209, %v1443
        %v1445 = vmul.f32 %v453, -0.23662178
        %v1446 = vmul.f32 %v454, -0.23662178
        %v1447 = vadd.f32 %v1445, 0.0
        %v1448 = vadd.f32 %v1446, 0.0
        %v1449 = vmul.f32 %v463, 0.2726561
        %v1450 = vmul.f32 %v472, 0.2726561
        %v1451 = vadd.f32 %v1447, %v1449
        %v1452 = vadd.f32 %v1448, %v1450
        %v1453 = vmul.f32 %v453, -0.047017913
        %v1454 = vmul.f32 %v454, -0.047017913
        %1457 = vrot.lane.b32.xlu0 %v1453, 112
        %v1458 = vpop.permute.xlu0 %1457
        %1459 = vrot.lane.b32.xlu0 %v1454, 112
        %v1460 = vpop.permute.xlu0 %1459
        %v1461 = vsel %vm492, %v487, %v1458
        %v1462 = vsel %vm492, %v1458, %v1460
        %v1466 = vadd.f32 %v1461, 0.0
        %v1467 = vadd.f32 %v1451, %v1462
        %v1468 = vadd.f32 %v1452, %v1460
        %v1469 = vmul.f32 %v463, -0.087850764
        %v1470 = vmul.f32 %v472, -0.087850764
        %1473 = vrot.lane.b32.xlu0 %v1469, 112
        %v1474 = vpop.permute.xlu0 %1473
        %1475 = vrot.lane.b32.xlu0 %v1470, 112
        %v1476 = vpop.permute.xlu0 %1475
        %v1477 = vsel %vm492, %v487, %v1474
        %v1478 = vsel %vm492, %v1474, %v1476
        %v1482 = vadd.f32 %v1466, %v1477
        %v1483 = vadd.f32 %v1467, %v1478
        %v1484 = vadd.f32 %v1468, %v1476
        %v1485 = vmul.f32 %v453, 0.08043536
        %v1486 = vmul.f32 %v454, 0.08043536
        %1489 = vrot.lane.b32.xlu0 %v1485, 96
        %v1490 = vpop.permute.xlu0 %1489
        %1491 = vrot.lane.b32.xlu0 %v1486, 96
        %v1492 = vpop.permute.xlu0 %1491
        %v1493 = vsel %vm528, %v523, %v1490
        %v1494 = vsel %vm528, %v1490, %v1492
        %v1498 = vadd.f32 %v1482, %v1493
        %v1499 = vadd.f32 %v1483, %v1494
        %v1500 = vadd.f32 %v1484, %v1492
        %v1501 = vmul.f32 %v463, -0.07430086
        %v1502 = vmul.f32 %v472, -0.07430086
        %1505 = vrot.lane.b32.xlu0 %v1501, 96
        %v1506 = vpop.permute.xlu0 %1505
        %1507 = vrot.lane.b32.xlu0 %v1502, 96
        %v1508 = vpop.permute.xlu0 %1507
        %v1509 = vsel %vm528, %v542, %v1506
        %v1510 = vsel %vm528, %v1506, %v1508
        %v1514 = vadd.f32 %v1498, %v1509
        %v1515 = vadd.f32 %v1499, %v1510
        %v1516 = vadd.f32 %v1500, %v1508
        %v1517 = vmul.f32 %v453, -0.15395713
        %v1518 = vmul.f32 %v454, -0.15395713
        %1521 = vrot.lane.b32.xlu0 %v1517, 80
        %v1522 = vpop.permute.xlu0 %1521
        %1523 = vrot.lane.b32.xlu0 %v1518, 80
        %v1524 = vpop.permute.xlu0 %1523
        %v1525 = vsel %vm565, %v1522, %v1524
        %v1526 = vsel %vm565, %v1524, %v560
        %v1530 = vadd.f32 %v1514, %v1522
        %v1531 = vadd.f32 %v1515, %v1525
        %v1532 = vadd.f32 %v1516, %v1526
        %v1533 = vmul.f32 %v463, -0.041391086
        %v1534 = vmul.f32 %v472, -0.041391086
        %1537 = vrot.lane.b32.xlu0 %v1533, 80
        %v1538 = vpop.permute.xlu0 %1537
        %1539 = vrot.lane.b32.xlu0 %v1534, 80
        %v1540 = vpop.permute.xlu0 %1539
        %v1541 = vsel %vm565, %v1538, %v1540
        %v1542 = vsel %vm565, %v1540, %v560
        %v1546 = vadd.f32 %v1530, %v1538
        %v1547 = vadd.f32 %v1531, %v1541
        %v1548 = vadd.f32 %v1532, %v1542
        %v1549 = vmul.f32 %v453, 0.057399344
        %v1550 = vmul.f32 %v454, 0.057399344
        %1553 = vrot.lane.b32.xlu0 %v1549, 64
        %v1554 = vpop.permute.xlu0 %1553
        %1555 = vrot.lane.b32.xlu0 %v1550, 64
        %v1556 = vpop.permute.xlu0 %1555
        %v1557 = vsel %vm602, %v1554, %v1556
        %v1558 = vsel %vm602, %v1556, %v620
        %v1562 = vadd.f32 %v1546, %v1554
        %v1563 = vadd.f32 %v1547, %v1557
        %v1564 = vadd.f32 %v1548, %v1558
        %v1565 = vmul.f32 %v463, 0.12575577
        %v1566 = vmul.f32 %v472, 0.12575577
        %1569 = vrot.lane.b32.xlu0 %v1565, 64
        %v1570 = vpop.permute.xlu0 %1569
        %1571 = vrot.lane.b32.xlu0 %v1566, 64
        %v1572 = vpop.permute.xlu0 %1571
        %v1573 = vsel %vm602, %v1570, %v1572
        %v1574 = vsel %vm602, %v1572, %v620
        %v1578 = vadd.f32 %v1562, %v1570
        %v1579 = vadd.f32 %v1563, %v1573
        %v1580 = vadd.f32 %v1564, %v1574
        %v1581 = vmul.f32 %v453, -0.037963737
        %v1582 = vmul.f32 %v454, -0.037963737
        %1585 = vrot.lane.b32.xlu0 %v1581, 48
        %v1586 = vpop.permute.xlu0 %1585
        %1587 = vrot.lane.b32.xlu0 %v1582, 48
        %v1588 = vpop.permute.xlu0 %1587
        %v1589 = vsel %vm639, %v1586, %v1588
        %v1590 = vsel %vm639, %v1588, %v638
        %v1594 = vadd.f32 %v1578, %v1586
        %v1595 = vadd.f32 %v1579, %v1589
        %v1596 = vadd.f32 %v1580, %v1590
        %v1597 = vmul.f32 %v463, -0.009970019
        %v1598 = vmul.f32 %v472, -0.009970019
        %1601 = vrot.lane.b32.xlu0 %v1597, 48
        %v1602 = vpop.permute.xlu0 %1601
        %1603 = vrot.lane.b32.xlu0 %v1598, 48
        %v1604 = vpop.permute.xlu0 %1603
        %v1605 = vsel %vm639, %v1602, %v1604
        %v1606 = vsel %vm639, %v1604, %v638
        %v1610 = vadd.f32 %v1594, %v1602
        %v1611 = vadd.f32 %v1595, %v1605
        %v1612 = vadd.f32 %v1596, %v1606
        %v1613 = vmul.f32 %v453, -0.00426945
        %v1614 = vmul.f32 %v454, -0.00426945
        %1617 = vrot.lane.b32.xlu0 %v1613, 32
        %v1618 = vpop.permute.xlu0 %1617
        %1619 = vrot.lane.b32.xlu0 %v1614, 32
        %v1620 = vpop.permute.xlu0 %1619
        %v1621 = vsel %vm676, %v1618, %v1620
        %v1622 = vsel %vm676, %v1620, %v1385
        %v1626 = vadd.f32 %v1610, %v1618
        %v1627 = vadd.f32 %v1611, %v1621
        %v1628 = vadd.f32 %v1612, %v1622
        %v1629 = vmul.f32 %v463, 0.15672876
        %v1630 = vmul.f32 %v472, 0.15672876
        %1633 = vrot.lane.b32.xlu0 %v1629, 32
        %v1634 = vpop.permute.xlu0 %1633
        %1635 = vrot.lane.b32.xlu0 %v1630, 32
        %v1636 = vpop.permute.xlu0 %1635
        %v1637 = vsel %vm676, %v1634, %v1636
        %v1638 = vsel %vm676, %v1636, %v675
        %v1642 = vadd.f32 %v1626, %v1634
        %v1643 = vadd.f32 %v1627, %v1637
        %v1644 = vadd.f32 %v1628, %v1638
        %s1645 = scalar_lea.vmem %s5, 4
        %v1646 = vld [vmem:[%s1645] ss:$8 sm:$0x3]
        %v1650 = vcombine.low %v1642, %v1643
        %v1652 = vunpack.c.l.s4 1966171168
        %v1653 = vunpack.c.0.s8 %v1652
        %v1654 = vlaneseq
        %v1655 = vshrl.u32 %v1654, 7
        %v1656 = vsub.s32 %v1653, %v1655
        %v1657 = vrot.slane %v1650, %v1656
        %v1659 = vunpack.c.l.s4 1966171168
        %v1660 = vunpack.c.0.s8 %v1659
        %v1661 = vlaneseq
        %v1662 = vshrl.u32 %v1661, 7
        %v1663 = vsub.s32 %v1660, %v1662
        %v1664 = vrot.slane %v1644, %v1663
        %v1665 = vcombine.low %v1657, %v1664
        %v1667 = vunpack.c.l.s4 1966171168
        %v1668 = vunpack.c.0.s8 %v1667
        %v1669 = vlaneseq
        %v1670 = vshrl.u32 %v1669, 7
        %v1671 = vsub.s32 %v1668, %v1670
        %v1672 = vrot.slane %v1665, %v1671
        %1673 = vrot.lane.b32.xlu0 %v1672, 47
        %v1674 = vpop.permute.xlu0 %1673
        %v1675 = vrot.slane %v1674, 1
        %vm1676 = vcmask 384000
        %v1677 = vsel %vm1676, %v1674, %v1675
        %v1679 = vmul.f32 %v1646, %v1677
        %v1680 = vadd.f32 %v1444, %v1679
        %v1681 = vmul.f32 %v453, 0.08959463
        %v1682 = vmul.f32 %v454, 0.08959463
        %v1683 = vadd.f32 %v1681, 0.0
        %v1684 = vadd.f32 %v1682, 0.0
        %v1685 = vmul.f32 %v463, 0.054594617
        %v1686 = vmul.f32 %v472, 0.054594617
        %v1687 = vadd.f32 %v1683, %v1685
        %v1688 = vadd.f32 %v1684, %v1686
        %v1689 = vmul.f32 %v453, -0.07725489
        %v1690 = vmul.f32 %v454, -0.07725489
        %1693 = vrot.lane.b32.xlu0 %v1689, 112
        %v1694 = vpop.permute.xlu0 %1693
        %1695 = vrot.lane.b32.xlu0 %v1690, 112
        %v1696 = vpop.permute.xlu0 %1695
        %v1697 = vsel %vm492, %v487, %v1694
        %v1698 = vsel %vm492, %v1694, %v1696
        %v1702 = vadd.f32 %v1697, 0.0
        %v1703 = vadd.f32 %v1687, %v1698
        %v1704 = vadd.f32 %v1688, %v1696
        %v1705 = vmul.f32 %v463, -0.068887144
        %v1706 = vmul.f32 %v472, -0.068887144
        %1709 = vrot.lane.b32.xlu0 %v1705, 112
        %v1710 = vpop.permute.xlu0 %1709
        %1711 = vrot.lane.b32.xlu0 %v1706, 112
        %v1712 = vpop.permute.xlu0 %1711
        %v1713 = vsel %vm492, %v487, %v1710
        %v1714 = vsel %vm492, %v1710, %v1712
        %v1718 = vadd.f32 %v1702, %v1713
        %v1719 = vadd.f32 %v1703, %v1714
        %v1720 = vadd.f32 %v1704, %v1712
        %v1721 = vmul.f32 %v453, 0.05346756
        %v1722 = vmul.f32 %v454, 0.05346756
        %1725 = vrot.lane.b32.xlu0 %v1721, 96
        %v1726 = vpop.permute.xlu0 %1725
        %1727 = vrot.lane.b32.xlu0 %v1722, 96
        %v1728 = vpop.permute.xlu0 %1727
        %v1729 = vsel %vm528, %v523, %v1726
        %v1730 = vsel %vm528, %v1726, %v1728
        %v1734 = vadd.f32 %v1718, %v1729
        %v1735 = vadd.f32 %v1719, %v1730
        %v1736 = vadd.f32 %v1720, %v1728
        %v1737 = vmul.f32 %v463, -0.073137864
        %v1738 = vmul.f32 %v472, -0.073137864
        %1741 = vrot.lane.b32.xlu0 %v1737, 96
        %v1742 = vpop.permute.xlu0 %1741
        %1743 = vrot.lane.b32.xlu0 %v1738, 96
        %v1744 = vpop.permute.xlu0 %1743
        %v1745 = vsel %vm528, %v542, %v1742
        %v1746 = vsel %vm528, %v1742, %v1744
        %v1750 = vadd.f32 %v1734, %v1745
        %v1751 = vadd.f32 %v1735, %v1746
        %v1752 = vadd.f32 %v1736, %v1744
        %v1753 = vmul.f32 %v453, 0.07592548
        %v1754 = vmul.f32 %v454, 0.07592548
        %1757 = vrot.lane.b32.xlu0 %v1753, 80
        %v1758 = vpop.permute.xlu0 %1757
        %1759 = vrot.lane.b32.xlu0 %v1754, 80
        %v1760 = vpop.permute.xlu0 %1759
        %v1761 = vsel %vm565, %v1758, %v1760
        %v1762 = vsel %vm565, %v1760, %v579
        %v1766 = vadd.f32 %v1750, %v1758
        %v1767 = vadd.f32 %v1751, %v1761
        %v1768 = vadd.f32 %v1752, %v1762
        %v1769 = vmul.f32 %v463, 0.10010957
        %v1770 = vmul.f32 %v472, 0.10010957
        %1773 = vrot.lane.b32.xlu0 %v1769, 80
        %v1774 = vpop.permute.xlu0 %1773
        %1775 = vrot.lane.b32.xlu0 %v1770, 80
        %v1776 = vpop.permute.xlu0 %1775
        %v1777 = vsel %vm565, %v1774, %v1776
        %v1778 = vsel %vm565, %v1776, %v579
        %v1782 = vadd.f32 %v1766, %v1774
        %v1783 = vadd.f32 %v1767, %v1777
        %v1784 = vadd.f32 %v1768, %v1778
        %v1785 = vmul.f32 %v453, 0.13014865
        %v1786 = vmul.f32 %v454, 0.13014865
        %1789 = vrot.lane.b32.xlu0 %v1785, 64
        %v1790 = vpop.permute.xlu0 %1789
        %1791 = vrot.lane.b32.xlu0 %v1786, 64
        %v1792 = vpop.permute.xlu0 %1791
        %v1793 = vsel %vm602, %v1790, %v1792
        %v1794 = vsel %vm602, %v1792, %v620
        %v1798 = vadd.f32 %v1782, %v1790
        %v1799 = vadd.f32 %v1783, %v1793
        %v1800 = vadd.f32 %v1784, %v1794
        %v1801 = vmul.f32 %v463, -0.040910255
        %v1802 = vmul.f32 %v472, -0.040910255
        %1805 = vrot.lane.b32.xlu0 %v1801, 64
        %v1806 = vpop.permute.xlu0 %1805
        %1807 = vrot.lane.b32.xlu0 %v1802, 64
        %v1808 = vpop.permute.xlu0 %1807
        %v1809 = vsel %vm602, %v1806, %v1808
        %v1810 = vsel %vm602, %v1808, %v601
        %v1814 = vadd.f32 %v1798, %v1806
        %v1815 = vadd.f32 %v1799, %v1809
        %v1816 = vadd.f32 %v1800, %v1810
        %v1817 = vmul.f32 %v453, -0.19037591
        %v1818 = vmul.f32 %v454, -0.19037591
        %1821 = vrot.lane.b32.xlu0 %v1817, 48
        %v1822 = vpop.permute.xlu0 %1821
        %1823 = vrot.lane.b32.xlu0 %v1818, 48
        %v1824 = vpop.permute.xlu0 %1823
        %v1825 = vsel %vm639, %v1822, %v1824
        %v1826 = vsel %vm639, %v1824, %v638
        %v1830 = vadd.f32 %v1814, %v1822
        %v1831 = vadd.f32 %v1815, %v1825
        %v1832 = vadd.f32 %v1816, %v1826
        %v1833 = vmul.f32 %v463, -0.046771467
        %v1834 = vmul.f32 %v472, -0.046771467
        %1837 = vrot.lane.b32.xlu0 %v1833, 48
        %v1838 = vpop.permute.xlu0 %1837
        %1839 = vrot.lane.b32.xlu0 %v1834, 48
        %v1840 = vpop.permute.xlu0 %1839
        %v1841 = vsel %vm639, %v1838, %v1840
        %v1842 = vsel %vm639, %v1840, %v638
        %v1846 = vadd.f32 %v1830, %v1838
        %v1847 = vadd.f32 %v1831, %v1841
        %v1848 = vadd.f32 %v1832, %v1842
        %v1849 = vmul.f32 %v453, -0.01227923
        %v1850 = vmul.f32 %v454, -0.01227923
        %1853 = vrot.lane.b32.xlu0 %v1849, 32
        %v1854 = vpop.permute.xlu0 %1853
        %1855 = vrot.lane.b32.xlu0 %v1850, 32
        %v1856 = vpop.permute.xlu0 %1855
        %v1857 = vsel %vm676, %v1854, %v1856
        %v1858 = vsel %vm676, %v1856, %v1385
        %v1862 = vadd.f32 %v1846, %v1854
        %v1863 = vadd.f32 %v1847, %v1857
        %v1864 = vadd.f32 %v1848, %v1858
        %v1865 = vmul.f32 %v463, -0.065670416
        %v1866 = vmul.f32 %v472, -0.065670416
        %1869 = vrot.lane.b32.xlu0 %v1865, 32
        %v1870 = vpop.permute.xlu0 %1869
        %1871 = vrot.lane.b32.xlu0 %v1866, 32
        %v1872 = vpop.permute.xlu0 %1871
        %v1873 = vsel %vm676, %v1870, %v1872
        %v1874 = vsel %vm676, %v1872, %v1385
        %v1878 = vadd.f32 %v1862, %v1870
        %v1879 = vadd.f32 %v1863, %v1873
        %v1880 = vadd.f32 %v1864, %v1874
        %s1881 = scalar_lea.vmem %s5, 5
        %v1882 = vld [vmem:[%s1881] ss:$8 sm:$0x3]
        %v1886 = vcombine.low %v1878, %v1879
        %v1888 = vunpack.c.l.s4 1966171168
        %v1889 = vunpack.c.0.s8 %v1888
        %v1890 = vlaneseq
        %v1891 = vshrl.u32 %v1890, 7
        %v1892 = vsub.s32 %v1889, %v1891
        %v1893 = vrot.slane %v1886, %v1892
        %v1895 = vunpack.c.l.s4 1966171168
        %v1896 = vunpack.c.0.s8 %v1895
        %v1897 = vlaneseq
        %v1898 = vshrl.u32 %v1897, 7
        %v1899 = vsub.s32 %v1896, %v1898
        %v1900 = vrot.slane %v1880, %v1899
        %v1901 = vcombine.low %v1893, %v1900
        %v1903 = vunpack.c.l.s4 1966171168
        %v1904 = vunpack.c.0.s8 %v1903
        %v1905 = vlaneseq
        %v1906 = vshrl.u32 %v1905, 7
        %v1907 = vsub.s32 %v1904, %v1906
        %v1908 = vrot.slane %v1901, %v1907
        %1909 = vrot.lane.b32.xlu0 %v1908, 46
        %v1910 = vpop.permute.xlu0 %1909
        %v1911 = vrot.slane %v1910, 1
        %vm1912 = vcmask 375808
        %v1913 = vsel %vm1912, %v1910, %v1911
        %v1915 = vmul.f32 %v1882, %v1913
        %v1916 = vadd.f32 %v1680, %v1915
        %v1917 = vmul.f32 %v453, 0.14628075
        %v1918 = vmul.f32 %v454, 0.14628075
        %v1919 = vadd.f32 %v1917, 0.0
        %v1920 = vadd.f32 %v1918, 0.0
        %v1921 = vmul.f32 %v463, 0.021978509
        %v1922 = vmul.f32 %v472, 0.021978509
        %v1923 = vadd.f32 %v1919, %v1921
        %v1924 = vadd.f32 %v1920, %v1922
        %v1925 = vmul.f32 %v453, -0.09703968
        %v1926 = vmul.f32 %v454, -0.09703968
        %1929 = vrot.lane.b32.xlu0 %v1925, 112
        %v1930 = vpop.permute.xlu0 %1929
        %1931 = vrot.lane.b32.xlu0 %v1926, 112
        %v1932 = vpop.permute.xlu0 %1931
        %v1933 = vsel %vm492, %v487, %v1930
        %v1934 = vsel %vm492, %v1930, %v1932
        %v1938 = vadd.f32 %v1933, 0.0
        %v1939 = vadd.f32 %v1923, %v1934
        %v1940 = vadd.f32 %v1924, %v1932
        %v1941 = vmul.f32 %v463, 0.087950334
        %v1942 = vmul.f32 %v472, 0.087950334
        %1945 = vrot.lane.b32.xlu0 %v1941, 112
        %v1946 = vpop.permute.xlu0 %1945
        %1947 = vrot.lane.b32.xlu0 %v1942, 112
        %v1948 = vpop.permute.xlu0 %1947
        %v1949 = vsel %vm492, %v749, %v1946
        %v1950 = vsel %vm492, %v1946, %v1948
        %v1954 = vadd.f32 %v1938, %v1949
        %v1955 = vadd.f32 %v1939, %v1950
        %v1956 = vadd.f32 %v1940, %v1948
        %v1957 = vmul.f32 %v453, 0.15578379
        %v1958 = vmul.f32 %v454, 0.15578379
        %1961 = vrot.lane.b32.xlu0 %v1957, 96
        %v1962 = vpop.permute.xlu0 %1961
        %1963 = vrot.lane.b32.xlu0 %v1958, 96
        %v1964 = vpop.permute.xlu0 %1963
        %v1965 = vsel %vm528, %v523, %v1962
        %v1966 = vsel %vm528, %v1962, %v1964
        %v1970 = vadd.f32 %v1954, %v1965
        %v1971 = vadd.f32 %v1955, %v1966
        %v1972 = vadd.f32 %v1956, %v1964
        %v1973 = vmul.f32 %v463, 0.01308349
        %v1974 = vmul.f32 %v472, 0.01308349
        %1977 = vrot.lane.b32.xlu0 %v1973, 96
        %v1978 = vpop.permute.xlu0 %1977
        %1979 = vrot.lane.b32.xlu0 %v1974, 96
        %v1980 = vpop.permute.xlu0 %1979
        %v1981 = vsel %vm528, %v523, %v1978
        %v1982 = vsel %vm528, %v1978, %v1980
        %v1986 = vadd.f32 %v1970, %v1981
        %v1987 = vadd.f32 %v1971, %v1982
        %v1988 = vadd.f32 %v1972, %v1980
        %v1989 = vmul.f32 %v453, 0.04076759
        %v1990 = vmul.f32 %v454, 0.04076759
        %1993 = vrot.lane.b32.xlu0 %v1989, 80
        %v1994 = vpop.permute.xlu0 %1993
        %1995 = vrot.lane.b32.xlu0 %v1990, 80
        %v1996 = vpop.permute.xlu0 %1995
        %v1997 = vsel %vm565, %v1994, %v1996
        %v1998 = vsel %vm565, %v1996, %v579
        %v2002 = vadd.f32 %v1986, %v1994
        %v2003 = vadd.f32 %v1987, %v1997
        %v2004 = vadd.f32 %v1988, %v1998
        %v2005 = vmul.f32 %v463, 0.11120557
        %v2006 = vmul.f32 %v472, 0.11120557
        %2009 = vrot.lane.b32.xlu0 %v2005, 80
        %v2010 = vpop.permute.xlu0 %2009
        %2011 = vrot.lane.b32.xlu0 %v2006, 80
        %v2012 = vpop.permute.xlu0 %2011
        %v2013 = vsel %vm565, %v2010, %v2012
        %v2014 = vsel %vm565, %v2012, %v579
        %v2018 = vadd.f32 %v2002, %v2010
        %v2019 = vadd.f32 %v2003, %v2013
        %v2020 = vadd.f32 %v2004, %v2014
        %v2021 = vmul.f32 %v453, 0.24099343
        %v2022 = vmul.f32 %v454, 0.24099343
        %2025 = vrot.lane.b32.xlu0 %v2021, 64
        %v2026 = vpop.permute.xlu0 %2025
        %2027 = vrot.lane.b32.xlu0 %v2022, 64
        %v2028 = vpop.permute.xlu0 %2027
        %v2029 = vsel %vm602, %v2026, %v2028
        %v2030 = vsel %vm602, %v2028, %v620
        %v2034 = vadd.f32 %v2018, %v2026
        %v2035 = vadd.f32 %v2019, %v2029
        %v2036 = vadd.f32 %v2020, %v2030
        %v2037 = vmul.f32 %v463, -0.072909325
        %v2038 = vmul.f32 %v472, -0.072909325
        %2041 = vrot.lane.b32.xlu0 %v2037, 64
        %v2042 = vpop.permute.xlu0 %2041
        %2043 = vrot.lane.b32.xlu0 %v2038, 64
        %v2044 = vpop.permute.xlu0 %2043
        %v2045 = vsel %vm602, %v2042, %v2044
        %v2046 = vsel %vm602, %v2044, %v601
        %v2050 = vadd.f32 %v2034, %v2042
        %v2051 = vadd.f32 %v2035, %v2045
        %v2052 = vadd.f32 %v2036, %v2046
        %v2053 = vmul.f32 %v453, -0.16843377
        %v2054 = vmul.f32 %v454, -0.16843377
        %2057 = vrot.lane.b32.xlu0 %v2053, 48
        %v2058 = vpop.permute.xlu0 %2057
        %2059 = vrot.lane.b32.xlu0 %v2054, 48
        %v2060 = vpop.permute.xlu0 %2059
        %v2061 = vsel %vm639, %v2058, %v2060
        %v2062 = vsel %vm639, %v2060, %v638
        %v2066 = vadd.f32 %v2050, %v2058
        %v2067 = vadd.f32 %v2051, %v2061
        %v2068 = vadd.f32 %v2052, %v2062
        %v2069 = vmul.f32 %v463, 0.05427013
        %v2070 = vmul.f32 %v472, 0.05427013
        %2073 = vrot.lane.b32.xlu0 %v2069, 48
        %v2074 = vpop.permute.xlu0 %2073
        %2075 = vrot.lane.b32.xlu0 %v2070, 48
        %v2076 = vpop.permute.xlu0 %2075
        %v2077 = vsel %vm639, %v2074, %v2076
        %v2078 = vsel %vm639, %v2076, %v657
        %v2082 = vadd.f32 %v2066, %v2074
        %v2083 = vadd.f32 %v2067, %v2077
        %v2084 = vadd.f32 %v2068, %v2078
        %v2085 = vmul.f32 %v453, 0.041124802
        %v2086 = vmul.f32 %v454, 0.041124802
        %2089 = vrot.lane.b32.xlu0 %v2085, 32
        %v2090 = vpop.permute.xlu0 %2089
        %2091 = vrot.lane.b32.xlu0 %v2086, 32
        %v2092 = vpop.permute.xlu0 %2091
        %v2093 = vsel %vm676, %v2090, %v2092
        %v2094 = vsel %vm676, %v2092, %v675
        %v2098 = vadd.f32 %v2082, %v2090
        %v2099 = vadd.f32 %v2083, %v2093
        %v2100 = vadd.f32 %v2084, %v2094
        %v2101 = vmul.f32 %v463, 0.062239707
        %v2102 = vmul.f32 %v472, 0.062239707
        %2105 = vrot.lane.b32.xlu0 %v2101, 32
        %v2106 = vpop.permute.xlu0 %2105
        %2107 = vrot.lane.b32.xlu0 %v2102, 32
        %v2108 = vpop.permute.xlu0 %2107
        %v2109 = vsel %vm676, %v2106, %v2108
        %v2110 = vsel %vm676, %v2108, %v675
        %v2114 = vadd.f32 %v2098, %v2106
        %v2115 = vadd.f32 %v2099, %v2109
        %v2116 = vadd.f32 %v2100, %v2110
        %s2117 = scalar_lea.vmem %s5, 6
        %v2118 = vld [vmem:[%s2117] ss:$8 sm:$0x3]
        %v2122 = vcombine.low %v2114, %v2115
        %v2124 = vunpack.c.l.s4 1966171168
        %v2125 = vunpack.c.0.s8 %v2124
        %v2126 = vlaneseq
        %v2127 = vshrl.u32 %v2126, 7
        %v2128 = vsub.s32 %v2125, %v2127
        %v2129 = vrot.slane %v2122, %v2128
        %v2131 = vunpack.c.l.s4 1966171168
        %v2132 = vunpack.c.0.s8 %v2131
        %v2133 = vlaneseq
        %v2134 = vshrl.u32 %v2133, 7
        %v2135 = vsub.s32 %v2132, %v2134
        %v2136 = vrot.slane %v2116, %v2135
        %v2137 = vcombine.low %v2129, %v2136
        %v2139 = vunpack.c.l.s4 1966171168
        %v2140 = vunpack.c.0.s8 %v2139
        %v2141 = vlaneseq
        %v2142 = vshrl.u32 %v2141, 7
        %v2143 = vsub.s32 %v2140, %v2142
        %v2144 = vrot.slane %v2137, %v2143
        %2145 = vrot.lane.b32.xlu0 %v2144, 45
        %v2146 = vpop.permute.xlu0 %2145
        %v2147 = vrot.slane %v2146, 1
        %vm2148 = vcmask 367616
        %v2149 = vsel %vm2148, %v2146, %v2147
        %v2151 = vmul.f32 %v2118, %v2149
        %v2152 = vadd.f32 %v1916, %v2151
        %v2153 = vxor.u32 %v2152, 2147483648
        %v2154 = vmul.f32 %v2153, 1.442695
        %v2155 = vpow.pop %v2154
        %v2156 = vadd.f32 %v2155, 1.0
        %v2157 = vrcp.pop %v2156
        %v2158 = vmul.f32 1.0, %v2157
        %v2160 = vlaneseq
        %v2161 = vshrl.u32 %v2160, 7
        %v2162 = vsub.s32 0, %v2161
        %v2163 = vrot.slane %v2158, %v2162
        %v2164 = vlaneseq
        %v2165 = vshrl.u32 %v2164, 7
        %v2166 = vsub.s32 1, %v2165
        %v2167 = vrot.slane %v2158, %v2166
        %v2170 = vmul.f32 %v426, %v2163
        %v2171 = vmul.f32 %v427, %v2167
        %v2172 = vmul.f32 %v428, %v2163
        %v2173 = vmul.f32 %v429, %v2167
        %v2174 = vmul.f32 %v430, %v2163
        %v2175 = vmul.f32 %v431, %v2167
        %v2176 = vmul.f32 %v432, %v2163
        %v2177 = vmul.f32 %v433, %v2167
        %2178 = vst [vmem:[%s269] sm:$0xff] %v2170
        %2179 = vst [vmem:[%s269 + $0x8] sm:$0xff] %v2171
        %2180 = vst [vmem:[%s269 + $0x10] sm:$0xff] %v2172
        %2181 = vst [vmem:[%s269 + $0x18] sm:$0xff] %v2173
        %2182 = vst [vmem:[%s269 + $0x20] sm:$0xff] %v2174
        %2183 = vst [vmem:[%s269 + $0x28] sm:$0xff] %v2175
        %2184 = vst [vmem:[%s269 + $0x30] sm:$0xff] %v2176
        %2185 = vst [vmem:[%s269 + $0x38] sm:$0xff] %v2177
        %s2186 = sand.u32 %s162, 1
        %s2187 = scalar_lea.sflag [#allocation4], %s2186
        %s2188 = sand.u32 %s162, 1
        %s2189 = smul.addr %s2188, 64
        %s2190 = scalar_lea.vmem [#allocation5], %s2189
        // Predicated region
        $region49: #{tpu_custom_call.1} parent=43 // pred_check
          %p2191 = pneg %p172
        $region50: #{tpu_custom_call.1} parent=43 // pred_check_branch
          %2193 = sbr.rel (%p2191) target = $region52
        $region51: #{tpu_custom_call.1} parent=43 // pred_region
          %s2195 = ssub.s32 1024, 1024
          %2196 = vsyncadd %s2187, %s2195
          %s2197 = smul.addr %s23, 8
          %s2198 = smul.addr %s2197, 128
          %s2199 = scalar_lea.hbm %s6, %s2198
          %s2200 = sshll.u32 %s2190, 4
          %s2201 = int_to_ptr.vmem [resolvable:$true] %s2200
          %2206 = dma.vmem_to_hbm [thread:$0]  %s2201, 1024, %s2199, %s2187, 256, 256, 16
        $region52: #{tpu_custom_call.1} parent=43 // pred_fallthru
          _
      $region44: #{tpu_custom_call.1} parent=5 // pred_fallthru
        _
      %p2207 = scmp.le.s32.totalorder 2, %s18
      // Predicated region
      $region53: #{tpu_custom_call.1} parent=5 // pred_check
        %p2208 = pneg %p2207
      $region54: #{tpu_custom_call.1} parent=5 // pred_check_branch
        %2210 = sbr.rel (%p2208) target = $region56
      $region55: #{tpu_custom_call.1} parent=5 // pred_region
        %s2211 = ssub.s32 %s18, 2
        // Predicated region
        $region57: #{tpu_custom_call.1} parent=55 // pred_check
          %p2212 = pneg %p178
        $region58: #{tpu_custom_call.1} parent=55 // pred_check_branch
          %2214 = sbr.rel (%p2212) target = $region60
        $region59: #{tpu_custom_call.1} parent=55 // pred_region
          %s2215 = sand.u32 %s163, 1
          %s2216 = scalar_lea.sflag [#allocation4], %s2215
          %s2217 = sand.u32 %s163, 1
          %s2218 = smul.addr %s2217, 64
          %s2219 = scalar_lea.vmem [#allocation5], %s2218
          %2220 = dma.done %s2216, 1024
        $region60: #{tpu_custom_call.1} parent=55 // pred_fallthru
          _
      $region56: #{tpu_custom_call.1} parent=5 // pred_fallthru
        _
    $region6: #{tpu_custom_call.1} parent=1 // loop_footer
      %s22 = sadd.s32 1, %s18
    $region7: #{tpu_custom_call.1} parent=1 // loop_footer_branch
      %17 = sbr.rel target = $region3
    $region8: #{tpu_custom_call.1} parent=1 // loop_exit
      _
    %2221 = vsyncpa [#allocation3], 1
    %s2222 = scalar_lea.sflag [#allocation3], 1
    %2223 = vsyncpa %s2222, 1
    %2224 = vsyncpa [#allocation4], 1
    %s2225 = scalar_lea.sflag [#allocation4], 1
    %2226 = vsyncpa %s2225, 1

</llo_original>
